<compile_context>
chip_gen: v7x
topology: tpu7x:2x2x1
jax: 0.10.0
libtpu: 0.0.40
codegen_flags: <defaults>
</compile_context>

<pallas_src>
import math
from functools import partial

import jax
import jax.numpy as jnp
from jax import lax
from jax.experimental import pallas as pl
from jax.experimental.pallas import tpu as pltpu  # noqa: F401  (TPU backend)


# ------------------------------------------------------------------ kernel ---
def _skill_mha_kernel(
    tgt_ref, mem_ref,            # (N, L, E), (N, S, E)
    wqT_ref,                     # (E, E)    Q weight, transposed, 1/sqrt(hd) folded in
    wkvT_ref, bkv_ref,           # (E, 2E), (1, 2E)   fused K/V projection
    woT_ref,                     # (E, E)    output projection, transposed
    w1T_ref, b1_ref, w2T_ref,    # (E, dff) bf16, (1, dff) f32, (dff, E) bf16
    vec_ref,                     # (7, E): [bq_scaled, bo, b2, ln2_g, ln2_b, ln3_g, ln3_b]
    out_ref,                     # (N, L, E)
    *, nhead: int,
):
    f32 = jnp.float32
    bf16 = jnp.bfloat16
    N, L, E = tgt_ref.shape
    S = mem_ref.shape[1]
    H = nhead
    hd = E // H

    vec = vec_ref[...]
    bq = vec[0:1]
    bo = vec[1:2]
    b2 = vec[2:3]
    g2, be2 = vec[3:4], vec[4:5]
    g3, be3 = vec[5:6], vec[6:7]

    x0 = tgt_ref[...].reshape(N * L, E)          # rows ordered (n, l)
    mm = mem_ref[...].reshape(N * S, E)          # rows ordered (n, s)

    # --- projections: only 2 MXU issues (Q; fused K/V). scale folded into wq/bq.
    q = jnp.dot(x0, wqT_ref[...], preferred_element_type=f32) + bq          # (N*L, E)
    kv = jnp.dot(mm, wkvT_ref[...], preferred_element_type=f32) + bkv_ref[...]  # (N*S, 2E)

    # --- head views: lane slices stacked on a leading batch axis (h, n) -------
    def heads(x, T):                              # (N*T, H*hd) -> (H*N, T, hd)
        hs = jnp.stack([x[:, h * hd:(h + 1) * hd] for h in range(H)], axis=0)
        return hs.reshape(H * N, T, hd)

    qh = heads(q, L)                              # (H*N, L, hd)
    kh = heads(kv[:, :E], S)                      # (H*N, S, hd)
    vh = heads(kv[:, E:], S)                      # (H*N, S, hd)
    kT = jnp.swapaxes(kh, 1, 2)                   # (H*N, hd, S)  tiny batched vxpose

    # --- attention: contraction is lane-of-LHS x sublane-of-RHS in both einsums
    s = jnp.einsum("bld,bds->bls", qh, kT, preferred_element_type=f32)       # (b, L, S)
    s = s - jnp.max(s, axis=-1, keepdims=True)
    p = jnp.exp(s)
    p = p / jnp.sum(p, axis=-1, keepdims=True)    # exact reciprocal (correctness)
    o = jnp.einsum("bls,bsd->bld", p, vh, preferred_element_type=f32)        # (b, L, hd)

    # --- merge heads with a lane concat, then ONE output-projection matmul ----
    o4 = o.reshape(H, N * L, hd)
    o_flat = jnp.concatenate([o4[h] for h in range(H)], axis=-1)             # (N*L, E)
    attn = jnp.dot(o_flat, woT_ref[...], preferred_element_type=f32) + bo

    def layer_norm(x, g, b):
        mu = jnp.mean(x, axis=-1, keepdims=True)
        var = jnp.mean((x - mu) ** 2, axis=-1, keepdims=True)
        return (x - mu) * lax.rsqrt(var + 1e-5) * g + b

    # --- residual + norm2 (dropout2 is identity at inference) -----------------
    x = layer_norm(x0 + attn, g2, be2)

    # --- feed-forward in bf16 operands / f32 accumulation ---------------------
    h1 = jnp.dot(x.astype(bf16), w1T_ref[...], preferred_element_type=f32) + b1_ref[...]
    h1 = jnp.maximum(h1, 0.0)
    ff = jnp.dot(h1.astype(bf16), w2T_ref[...], preferred_element_type=f32) + b2

    # --- residual + norm3 ------------------------------------------------------
    y = layer_norm(x + ff, g3, be3)

    # NOTE: E=32 < 128 lanes so this store is lane-masked; repacking to a
    # lane-dense slab costs as much as it saves at these shapes (per review).
    out_ref[...] = y.reshape(N, L, E).astype(out_ref.dtype)


# --------------------------------------------------- one-time weight packing ---
def _pack_params(params, *, nhead):
    """Runs ONCE at init; returns the packed operand tuple for the kernel."""
    E = params["out_proj_w"].shape[0]
    hd = E // nhead
    scale = 1.0 / math.sqrt(hd)

    wq = params["in_proj_w"][:E]                 # (E, E)
    bq = params["in_proj_b"][:E]                 # (E,)
    wkv = params["in_proj_w"][E:]                # (2E, E)
    bkv = params["in_proj_b"][E:]                # (2E,)

    vec = jnp.stack([scale * bq,
                     params["out_proj_b"], params["b2"],
                     params["ln2_g"], params["ln2_b"],
                     params["ln3_g"], params["ln3_b"]], axis=0)   # (7, E)

    packed = (
        (scale * wq).T,                          # wqT  (E, E)
        wkv.T,                                   # wkvT (E, 2E)
        bkv.reshape(1, 2 * E),                   # bkv  (1, 2E)
        params["out_proj_w"].T,                  # woT  (E, E)
        params["w1"].T.astype(jnp.bfloat16),     # w1T  (E, dff)
        params["b1"].reshape(1, -1),             # b1   (1, dff)
        params["w2"].T.astype(jnp.bfloat16),     # w2T  (dff, E)
        vec,                                     # (7, E)
    )
    return jax.tree_util.tree_map(jax.device_put, packed)


# ----------------------------------------------------------------- wrapper ---
def make_skill_mha(params, *, nhead):
    """Returns a jitted forward: (L,N,E), (S,N,E) -> (L,N,E). Weight packing is
    hoisted so only two tiny activation transposes + the pallas_call run per call."""
    packed = _pack_params(params, nhead=nhead)

    @jax.jit
    def fwd(tgt, memory):
        L, N, E = tgt.shape
        tgt_b = jnp.transpose(tgt, (1, 0, 2))        # (N, L, E)
        mem_b = jnp.transpose(memory, (1, 0, 2))     # (N, S, E)
        out = pl.pallas_call(
            partial(_skill_mha_kernel, nhead=nhead),
            out_shape=jax.ShapeDtypeStruct((N, L, E), jnp.float32),
            # no grid: single invocation, all operands resident in VMEM
            # (~60 KB total), so there is no grid-step / pipelining overhead.
        )(tgt_b, mem_b, *packed)
        return jnp.transpose(out, (1, 0, 2))

    return fwd


# --------------------------------------------------------- pure-JAX reference ---
def _reference(tgt, memory, p, nhead):
    L, N, E = tgt.shape
    hd = E // nhead
    wq, wk, wv = jnp.split(p["in_proj_w"], 3, axis=0)
    bq, bk, bv = jnp.split(p["in_proj_b"], 3, axis=0)

    def ln(x, g, b):
        mu = x.mean(-1, keepdims=True)
        var = ((x - mu) ** 2).mean(-1, keepdims=True)
        return (x - mu) / jnp.sqrt(var + 1e-5) * g + b

    q = tgt @ wq.T + bq
    k = memory @ wk.T + bk
    v = memory @ wv.T + bv
    qh = q.reshape(L, N, nhead, hd)
    kh = k.reshape(-1, N, nhead, hd)
    vh = v.reshape(-1, N, nhead, hd)
    s = jnp.einsum("lnhd,snhd->nhls", qh, kh) / math.sqrt(hd)
    pw = jax.nn.softmax(s, axis=-1)
    o = jnp.einsum("nhls,snhd->lnhd", pw, vh).reshape(L, N, E)
    attn = o @ p["out_proj_w"].T + p["out_proj_b"]
    x = ln(tgt + attn, p["ln2_g"], p["ln2_b"])
    ff = jax.nn.relu(x @ p["w1"].T + p["b1"]) @ p["w2"].T + p["b2"]
    return ln(x + ff, p["ln3_g"], p["ln3_b"])


# -------------------------------------------------------------------- main ---
if __name__ == "__main__":
    d_model, nhead, dff = 32, 4, 128
    L, S, N = 8, 8, 2

    key = jax.random.PRNGKey(0)
    ks = jax.random.split(key, 12)
    sc = 0.1
    params = {
        "in_proj_w":  sc * jax.random.normal(ks[0], (3 * d_model, d_model), jnp.float32),
        "in_proj_b":  sc * jax.random.normal(ks[1], (3 * d_model,), jnp.float32),
        "out_proj_w": sc * jax.random.normal(ks[2], (d_model, d_model), jnp.float32),
        "out_proj_b": sc * jax.random.normal(ks[3], (d_model,), jnp.float32),
        "w1": sc * jax.random.normal(ks[4], (dff, d_model), jnp.float32),
        "b1": sc * jax.random.normal(ks[5], (dff,), jnp.float32),
        "w2": sc * jax.random.normal(ks[6], (d_model, dff), jnp.float32),
        "b2": sc * jax.random.normal(ks[7], (d_model,), jnp.float32),
        "ln2_g": jnp.ones((d_model,), jnp.float32),
        "ln2_b": jnp.zeros((d_model,), jnp.float32),
        "ln3_g": jnp.ones((d_model,), jnp.float32),
        "ln3_b": jnp.zeros((d_model,), jnp.float32),
    }

    tgt = jax.random.normal(ks[8], (L, N, d_model), jnp.float32)
    memory = jax.random.normal(ks[9], (S, N, d_model), jnp.float32)

    skill_mha = make_skill_mha(params, nhead=nhead)   # packs weights once
    out = skill_mha(tgt, memory)
    out = jax.block_until_ready(out)

    ref = _reference(tgt, memory, params, nhead)
    assert out.shape == (L, N, d_model)
    # tolerance covers the bf16 FFW operands (softmax itself is exact f32)
    assert jnp.allclose(out, ref, atol=1e-2, rtol=1e-2), "mismatch vs reference"

    print("KERNEL_OK")
</pallas_src>

<mosaic_0001>
module attributes {stable_mosaic.version = 11 : i64} {
  func.func @_skill_mha_kernel(%arg0: memref<2x8x32xf32, #tpu.memory_space<vmem>>, %arg1: memref<2x8x32xf32, #tpu.memory_space<vmem>>, %arg2: memref<32x32xf32, #tpu.memory_space<vmem>>, %arg3: memref<32x64xf32, #tpu.memory_space<vmem>>, %arg4: memref<1x64xf32, #tpu.memory_space<vmem>>, %arg5: memref<32x32xf32, #tpu.memory_space<vmem>>, %arg6: memref<32x128xbf16, #tpu.memory_space<vmem>>, %arg7: memref<1x128xf32, #tpu.memory_space<vmem>>, %arg8: memref<128x32xbf16, #tpu.memory_space<vmem>>, %arg9: memref<7x32xf32, #tpu.memory_space<vmem>>, %arg10: memref<2x8x32xf32, #tpu.memory_space<vmem>>) attributes {dimension_semantics = [], scalar_prefetch = 0 : i64, scratch_operands = 0 : i64, tpu.core_type = #tpu.core_type<tc>} {
    %c0 = arith.constant 0 : index
    %c0_0 = arith.constant 0 : index
    %0 = vector.load %arg9[%c0, %c0_0] : memref<7x32xf32, #tpu.memory_space<vmem>>, vector<7x32xf32>
    %1 = vector.extract_strided_slice %0 {offsets = [0, 0], sizes = [1, 32], strides = [1, 1]} : vector<7x32xf32> to vector<1x32xf32>
    %2 = vector.extract_strided_slice %0 {offsets = [1, 0], sizes = [1, 32], strides = [1, 1]} : vector<7x32xf32> to vector<1x32xf32>
    %3 = vector.extract_strided_slice %0 {offsets = [2, 0], sizes = [1, 32], strides = [1, 1]} : vector<7x32xf32> to vector<1x32xf32>
    %4 = vector.extract_strided_slice %0 {offsets = [3, 0], sizes = [1, 32], strides = [1, 1]} : vector<7x32xf32> to vector<1x32xf32>
    %5 = vector.extract_strided_slice %0 {offsets = [4, 0], sizes = [1, 32], strides = [1, 1]} : vector<7x32xf32> to vector<1x32xf32>
    %6 = vector.extract_strided_slice %0 {offsets = [5, 0], sizes = [1, 32], strides = [1, 1]} : vector<7x32xf32> to vector<1x32xf32>
    %7 = vector.extract_strided_slice %0 {offsets = [6, 0], sizes = [1, 32], strides = [1, 1]} : vector<7x32xf32> to vector<1x32xf32>
    %c0_1 = arith.constant 0 : index
    %c0_2 = arith.constant 0 : index
    %c0_3 = arith.constant 0 : index
    %8 = vector.load %arg0[%c0_1, %c0_2, %c0_3] : memref<2x8x32xf32, #tpu.memory_space<vmem>>, vector<2x8x32xf32>
    %9 = vector.shape_cast %8 : vector<2x8x32xf32> to vector<16x32xf32>
    %c0_4 = arith.constant 0 : index
    %c0_5 = arith.constant 0 : index
    %c0_6 = arith.constant 0 : index
    %10 = vector.load %arg1[%c0_4, %c0_5, %c0_6] : memref<2x8x32xf32, #tpu.memory_space<vmem>>, vector<2x8x32xf32>
    %11 = vector.shape_cast %10 : vector<2x8x32xf32> to vector<16x32xf32>
    %c0_7 = arith.constant 0 : index
    %c0_8 = arith.constant 0 : index
    %12 = vector.load %arg2[%c0_7, %c0_8] : memref<32x32xf32, #tpu.memory_space<vmem>>, vector<32x32xf32>
    %cst = arith.constant dense<0.000000e+00> : vector<16x32xf32>
    %13 = tpu.matmul %9, %12, %cst {dimension_numbers = #tpu.dot_dimension_numbers<[1], [0], [0], [1], [0, 0, 1, 1], [], []>} : vector<16x32xf32>, vector<32x32xf32>, vector<16x32xf32> -> vector<16x32xf32>
    %14 = vector.broadcast %1 : vector<1x32xf32> to vector<16x32xf32>
    %15 = arith.addf %13, %14 : vector<16x32xf32>
    %c0_9 = arith.constant 0 : index
    %c0_10 = arith.constant 0 : index
    %16 = vector.load %arg3[%c0_9, %c0_10] : memref<32x64xf32, #tpu.memory_space<vmem>>, vector<32x64xf32>
    %cst_11 = arith.constant dense<0.000000e+00> : vector<16x64xf32>
    %17 = tpu.matmul %11, %16, %cst_11 {dimension_numbers = #tpu.dot_dimension_numbers<[1], [0], [0], [1], [0, 0, 1, 1], [], []>} : vector<16x32xf32>, vector<32x64xf32>, vector<16x64xf32> -> vector<16x64xf32>
    %c0_12 = arith.constant 0 : index
    %c0_13 = arith.constant 0 : index
    %18 = vector.load %arg4[%c0_12, %c0_13] : memref<1x64xf32, #tpu.memory_space<vmem>>, vector<1x64xf32>
    %19 = vector.broadcast %18 : vector<1x64xf32> to vector<16x64xf32>
    %20 = arith.addf %17, %19 : vector<16x64xf32>
    %21 = vector.extract_strided_slice %15 {offsets = [0, 0], sizes = [16, 8], strides = [1, 1]} : vector<16x32xf32> to vector<16x8xf32>
    %22 = vector.extract_strided_slice %15 {offsets = [0, 8], sizes = [16, 8], strides = [1, 1]} : vector<16x32xf32> to vector<16x8xf32>
    %23 = vector.extract_strided_slice %15 {offsets = [0, 16], sizes = [16, 8], strides = [1, 1]} : vector<16x32xf32> to vector<16x8xf32>
    %24 = vector.extract_strided_slice %15 {offsets = [0, 24], sizes = [16, 8], strides = [1, 1]} : vector<16x32xf32> to vector<16x8xf32>
    %25 = vector.shape_cast %21 : vector<16x8xf32> to vector<1x16x8xf32>
    %26 = vector.shape_cast %22 : vector<16x8xf32> to vector<1x16x8xf32>
    %27 = vector.shape_cast %23 : vector<16x8xf32> to vector<1x16x8xf32>
    %28 = vector.shape_cast %24 : vector<16x8xf32> to vector<1x16x8xf32>
    %29 = tpu.concatenate %25, %26, %27, %28 in 0 : vector<1x16x8xf32>, vector<1x16x8xf32>, vector<1x16x8xf32>, vector<1x16x8xf32> -> vector<4x16x8xf32>
    %30 = vector.shape_cast %29 : vector<4x16x8xf32> to vector<8x8x8xf32>
    %31 = vector.extract_strided_slice %20 {offsets = [0, 0], sizes = [16, 32], strides = [1, 1]} : vector<16x64xf32> to vector<16x32xf32>
    %32 = vector.extract_strided_slice %31 {offsets = [0, 0], sizes = [16, 8], strides = [1, 1]} : vector<16x32xf32> to vector<16x8xf32>
    %33 = vector.extract_strided_slice %31 {offsets = [0, 8], sizes = [16, 8], strides = [1, 1]} : vector<16x32xf32> to vector<16x8xf32>
    %34 = vector.extract_strided_slice %31 {offsets = [0, 16], sizes = [16, 8], strides = [1, 1]} : vector<16x32xf32> to vector<16x8xf32>
    %35 = vector.extract_strided_slice %31 {offsets = [0, 24], sizes = [16, 8], strides = [1, 1]} : vector<16x32xf32> to vector<16x8xf32>
    %36 = vector.shape_cast %32 : vector<16x8xf32> to vector<1x16x8xf32>
    %37 = vector.shape_cast %33 : vector<16x8xf32> to vector<1x16x8xf32>
    %38 = vector.shape_cast %34 : vector<16x8xf32> to vector<1x16x8xf32>
    %39 = vector.shape_cast %35 : vector<16x8xf32> to vector<1x16x8xf32>
    %40 = tpu.concatenate %36, %37, %38, %39 in 0 : vector<1x16x8xf32>, vector<1x16x8xf32>, vector<1x16x8xf32>, vector<1x16x8xf32> -> vector<4x16x8xf32>
    %41 = vector.shape_cast %40 : vector<4x16x8xf32> to vector<8x8x8xf32>
    %42 = vector.extract_strided_slice %20 {offsets = [0, 32], sizes = [16, 32], strides = [1, 1]} : vector<16x64xf32> to vector<16x32xf32>
    %43 = vector.extract_strided_slice %42 {offsets = [0, 0], sizes = [16, 8], strides = [1, 1]} : vector<16x32xf32> to vector<16x8xf32>
    %44 = vector.extract_strided_slice %42 {offsets = [0, 8], sizes = [16, 8], strides = [1, 1]} : vector<16x32xf32> to vector<16x8xf32>
    %45 = vector.extract_strided_slice %42 {offsets = [0, 16], sizes = [16, 8], strides = [1, 1]} : vector<16x32xf32> to vector<16x8xf32>
    %46 = vector.extract_strided_slice %42 {offsets = [0, 24], sizes = [16, 8], strides = [1, 1]} : vector<16x32xf32> to vector<16x8xf32>
    %47 = vector.shape_cast %43 : vector<16x8xf32> to vector<1x16x8xf32>
    %48 = vector.shape_cast %44 : vector<16x8xf32> to vector<1x16x8xf32>
    %49 = vector.shape_cast %45 : vector<16x8xf32> to vector<1x16x8xf32>
    %50 = vector.shape_cast %46 : vector<16x8xf32> to vector<1x16x8xf32>
    %51 = tpu.concatenate %47, %48, %49, %50 in 0 : vector<1x16x8xf32>, vector<1x16x8xf32>, vector<1x16x8xf32>, vector<1x16x8xf32> -> vector<4x16x8xf32>
    %52 = vector.shape_cast %51 : vector<4x16x8xf32> to vector<8x8x8xf32>
    %53 = tpu.transpose %41, [0, 2, 1] : vector<8x8x8xf32> -> vector<8x8x8xf32>
    "tpu.trace_start"() <{level = 10 : i32, message = "bld,bds->bls"}> : () -> ()
    %cst_14 = arith.constant dense<0.000000e+00> : vector<8x8x8xf32>
    %54 = tpu.matmul %30, %53, %cst_14 {dimension_numbers = #tpu.dot_dimension_numbers<[2], [1], [1], [2], [0, 0, 0, 1, 1, 2], [0], [0]>} : vector<8x8x8xf32>, vector<8x8x8xf32>, vector<8x8x8xf32> -> vector<8x8x8xf32>
    "tpu.trace_stop"() : () -> ()
    %cst_15 = arith.constant dense<0xFF800000> : vector<8x8xf32>
    %55 = vector.multi_reduction <maximumf>, %54, %cst_15 [2] : vector<8x8x8xf32> to vector<8x8xf32>
    %56 = vector.shape_cast %55 : vector<8x8xf32> to vector<8x8x1xf32>
    %57 = vector.broadcast %56 : vector<8x8x1xf32> to vector<8x8x8xf32>
    %58 = arith.subf %54, %57 : vector<8x8x8xf32>
    %59 = math.exp %58 : vector<8x8x8xf32>
    %cst_16 = arith.constant dense<0.000000e+00> : vector<8x8xf32>
    %60 = vector.multi_reduction <add>, %59, %cst_16 [2] : vector<8x8x8xf32> to vector<8x8xf32>
    %61 = vector.shape_cast %60 : vector<8x8xf32> to vector<8x8x1xf32>
    %62 = vector.broadcast %61 : vector<8x8x1xf32> to vector<8x8x8xf32>
    %63 = arith.divf %59, %62 : vector<8x8x8xf32>
    "tpu.trace_start"() <{level = 10 : i32, message = "bls,bsd->bld"}> : () -> ()
    %cst_17 = arith.constant dense<0.000000e+00> : vector<8x8x8xf32>
    %64 = tpu.matmul %63, %52, %cst_17 {dimension_numbers = #tpu.dot_dimension_numbers<[2], [1], [1], [2], [0, 0, 0, 1, 1, 2], [0], [0]>} : vector<8x8x8xf32>, vector<8x8x8xf32>, vector<8x8x8xf32> -> vector<8x8x8xf32>
    "tpu.trace_stop"() : () -> ()
    %65 = vector.shape_cast %64 : vector<8x8x8xf32> to vector<4x16x8xf32>
    %66 = vector.extract_strided_slice %65 {offsets = [0, 0, 0], sizes = [1, 16, 8], strides = [1, 1, 1]} : vector<4x16x8xf32> to vector<1x16x8xf32>
    %67 = vector.shape_cast %66 : vector<1x16x8xf32> to vector<16x8xf32>
    %68 = vector.extract_strided_slice %65 {offsets = [1, 0, 0], sizes = [1, 16, 8], strides = [1, 1, 1]} : vector<4x16x8xf32> to vector<1x16x8xf32>
    %69 = vector.shape_cast %68 : vector<1x16x8xf32> to vector<16x8xf32>
    %70 = vector.extract_strided_slice %65 {offsets = [2, 0, 0], sizes = [1, 16, 8], strides = [1, 1, 1]} : vector<4x16x8xf32> to vector<1x16x8xf32>
    %71 = vector.shape_cast %70 : vector<1x16x8xf32> to vector<16x8xf32>
    %72 = vector.extract_strided_slice %65 {offsets = [3, 0, 0], sizes = [1, 16, 8], strides = [1, 1, 1]} : vector<4x16x8xf32> to vector<1x16x8xf32>
    %73 = vector.shape_cast %72 : vector<1x16x8xf32> to vector<16x8xf32>
    %74 = tpu.concatenate %67, %69, %71, %73 in 1 : vector<16x8xf32>, vector<16x8xf32>, vector<16x8xf32>, vector<16x8xf32> -> vector<16x32xf32>
    %c0_18 = arith.constant 0 : index
    %c0_19 = arith.constant 0 : index
    %75 = vector.load %arg5[%c0_18, %c0_19] : memref<32x32xf32, #tpu.memory_space<vmem>>, vector<32x32xf32>
    %cst_20 = arith.constant dense<0.000000e+00> : vector<16x32xf32>
    %76 = tpu.matmul %74, %75, %cst_20 {dimension_numbers = #tpu.dot_dimension_numbers<[1], [0], [0], [1], [0, 0, 1, 1], [], []>} : vector<16x32xf32>, vector<32x32xf32>, vector<16x32xf32> -> vector<16x32xf32>
    %77 = vector.broadcast %2 : vector<1x32xf32> to vector<16x32xf32>
    %78 = arith.addf %76, %77 : vector<16x32xf32>
    %79 = arith.addf %9, %78 : vector<16x32xf32>
    %cst_21 = arith.constant dense<0.000000e+00> : vector<16xf32>
    %80 = vector.multi_reduction <add>, %79, %cst_21 [1] : vector<16x32xf32> to vector<16xf32>
    %81 = vector.shape_cast %80 : vector<16xf32> to vector<16x1xf32>
    %cst_22 = arith.constant 3.200000e+01 : f32
    %82 = vector.broadcast %cst_22 : f32 to vector<16x1xf32>
    %83 = arith.divf %81, %82 : vector<16x1xf32>
    %84 = vector.broadcast %83 : vector<16x1xf32> to vector<16x32xf32>
    %85 = arith.subf %79, %84 : vector<16x32xf32>
    %86 = arith.mulf %85, %85 : vector<16x32xf32>
    %cst_23 = arith.constant dense<0.000000e+00> : vector<16xf32>
    %87 = vector.multi_reduction <add>, %86, %cst_23 [1] : vector<16x32xf32> to vector<16xf32>
    %88 = vector.shape_cast %87 : vector<16xf32> to vector<16x1xf32>
    %cst_24 = arith.constant 3.200000e+01 : f32
    %89 = vector.broadcast %cst_24 : f32 to vector<16x1xf32>
    %90 = arith.divf %88, %89 : vector<16x1xf32>
    %91 = vector.broadcast %83 : vector<16x1xf32> to vector<16x32xf32>
    %92 = arith.subf %79, %91 : vector<16x32xf32>
    %cst_25 = arith.constant 9.99999974E-6 : f32
    %93 = vector.broadcast %cst_25 : f32 to vector<16x1xf32>
    %94 = arith.addf %90, %93 : vector<16x1xf32>
    %95 = math.rsqrt %94 : vector<16x1xf32>
    %96 = vector.broadcast %95 : vector<16x1xf32> to vector<16x32xf32>
    %97 = arith.mulf %92, %96 : vector<16x32xf32>
    %98 = vector.broadcast %4 : vector<1x32xf32> to vector<16x32xf32>
    %99 = arith.mulf %97, %98 : vector<16x32xf32>
    %100 = vector.broadcast %5 : vector<1x32xf32> to vector<16x32xf32>
    %101 = arith.addf %99, %100 : vector<16x32xf32>
    %102 = arith.truncf %101 : vector<16x32xf32> to vector<16x32xbf16>
    %c0_26 = arith.constant 0 : index
    %c0_27 = arith.constant 0 : index
    %103 = vector.load %arg6[%c0_26, %c0_27] : memref<32x128xbf16, #tpu.memory_space<vmem>>, vector<32x128xbf16>
    %cst_28 = arith.constant dense<0.000000e+00> : vector<16x128xf32>
    %104 = tpu.matmul %102, %103, %cst_28 {dimension_numbers = #tpu.dot_dimension_numbers<[1], [0], [0], [1], [0, 0, 1, 1], [], []>} : vector<16x32xbf16>, vector<32x128xbf16>, vector<16x128xf32> -> vector<16x128xf32>
    %c0_29 = arith.constant 0 : index
    %c0_30 = arith.constant 0 : index
    %105 = vector.load %arg7[%c0_29, %c0_30] : memref<1x128xf32, #tpu.memory_space<vmem>>, vector<1x128xf32>
    %106 = vector.broadcast %105 : vector<1x128xf32> to vector<16x128xf32>
    %107 = arith.addf %104, %106 : vector<16x128xf32>
    %cst_31 = arith.constant 0.000000e+00 : f32
    %108 = vector.broadcast %cst_31 : f32 to vector<16x128xf32>
    %109 = arith.maximumf %107, %108 : vector<16x128xf32>
    %110 = arith.truncf %109 : vector<16x128xf32> to vector<16x128xbf16>
    %c0_32 = arith.constant 0 : index
    %c0_33 = arith.constant 0 : index
    %111 = vector.load %arg8[%c0_32, %c0_33] : memref<128x32xbf16, #tpu.memory_space<vmem>>, vector<128x32xbf16>
    %cst_34 = arith.constant dense<0.000000e+00> : vector<16x32xf32>
    %112 = tpu.matmul %110, %111, %cst_34 {dimension_numbers = #tpu.dot_dimension_numbers<[1], [0], [0], [1], [0, 0, 1, 1], [], []>} : vector<16x128xbf16>, vector<128x32xbf16>, vector<16x32xf32> -> vector<16x32xf32>
    %113 = vector.broadcast %3 : vector<1x32xf32> to vector<16x32xf32>
    %114 = arith.addf %112, %113 : vector<16x32xf32>
    %115 = arith.addf %101, %114 : vector<16x32xf32>
    %cst_35 = arith.constant dense<0.000000e+00> : vector<16xf32>
    %116 = vector.multi_reduction <add>, %115, %cst_35 [1] : vector<16x32xf32> to vector<16xf32>
    %117 = vector.shape_cast %116 : vector<16xf32> to vector<16x1xf32>
    %cst_36 = arith.constant 3.200000e+01 : f32
    %118 = vector.broadcast %cst_36 : f32 to vector<16x1xf32>
    %119 = arith.divf %117, %118 : vector<16x1xf32>
    %120 = vector.broadcast %119 : vector<16x1xf32> to vector<16x32xf32>
    %121 = arith.subf %115, %120 : vector<16x32xf32>
    %122 = arith.mulf %121, %121 : vector<16x32xf32>
    %cst_37 = arith.constant dense<0.000000e+00> : vector<16xf32>
    %123 = vector.multi_reduction <add>, %122, %cst_37 [1] : vector<16x32xf32> to vector<16xf32>
    %124 = vector.shape_cast %123 : vector<16xf32> to vector<16x1xf32>
    %cst_38 = arith.constant 3.200000e+01 : f32
    %125 = vector.broadcast %cst_38 : f32 to vector<16x1xf32>
    %126 = arith.divf %124, %125 : vector<16x1xf32>
    %127 = vector.broadcast %119 : vector<16x1xf32> to vector<16x32xf32>
    %128 = arith.subf %115, %127 : vector<16x32xf32>
    %cst_39 = arith.constant 9.99999974E-6 : f32
    %129 = vector.broadcast %cst_39 : f32 to vector<16x1xf32>
    %130 = arith.addf %126, %129 : vector<16x1xf32>
    %131 = math.rsqrt %130 : vector<16x1xf32>
    %132 = vector.broadcast %131 : vector<16x1xf32> to vector<16x32xf32>
    %133 = arith.mulf %128, %132 : vector<16x32xf32>
    %134 = vector.broadcast %6 : vector<1x32xf32> to vector<16x32xf32>
    %135 = arith.mulf %133, %134 : vector<16x32xf32>
    %136 = vector.broadcast %7 : vector<1x32xf32> to vector<16x32xf32>
    %137 = arith.addf %135, %136 : vector<16x32xf32>
    %138 = vector.shape_cast %137 : vector<16x32xf32> to vector<2x8x32xf32>
    %c0_40 = arith.constant 0 : index
    %c0_41 = arith.constant 0 : index
    %c0_42 = arith.constant 0 : index
    %139 = vector.load %arg10[%c0_40, %c0_41, %c0_42] : memref<2x8x32xf32, #tpu.memory_space<vmem>>, vector<2x8x32xf32>
    tpu.vector_store %arg10[%c0_40, %c0_41, %c0_42], %138 {strides = array<i32>} : memref<2x8x32xf32, #tpu.memory_space<vmem>>, vector<2x8x32xf32>,
    return
  }
}

</mosaic_0001>

<llo_original>
// kernel: fwd.1
$region0: #{fwd.1}
  #allocation0 [shape = 'u32[]', space=smem, size = 0x4, offset = 0x4, fixed_abs, tag = 'smem constant byte address 0x4 - core index']
  #allocation1 [shape = 'u32[144,128]{1,0:T(1,128)}', space=vmem, size = 0x12000, scoped, tag = 'internal scratch']
  %s0 = inlined_call_operand.vmem [shape: f32[2,8,32], index: 0, kind: input, shape index: {}]
  %s1 = inlined_call_operand.vmem [shape: f32[2,8,32], index: 1, kind: input, shape index: {}]
  %s2 = inlined_call_operand.hbm [shape: f32[32,32], index: 2, kind: input, shape index: {}]
  %s3 = inlined_call_operand.hbm [shape: f32[32,64], index: 3, kind: input, shape index: {}]
  %s4 = inlined_call_operand.hbm [shape: f32[1,64], index: 4, kind: input, shape index: {}]
  %s5 = inlined_call_operand.vmem [shape: f32[32,32], index: 5, kind: input, shape index: {}]
  %s6 = inlined_call_operand.vmem [shape: bf16[32,128], index: 6, kind: input, shape index: {}]
  %s7 = inlined_call_operand.vmem [shape: f32[1,128], index: 7, kind: input, shape index: {}]
  %s8 = inlined_call_operand.vmem [shape: bf16[128,32], index: 8, kind: input, shape index: {}]
  %s9 = inlined_call_operand.hbm [shape: f32[7,32], index: 9, kind: input, shape index: {}]
  %s10 = inlined_call_operand.vmem [shape: f32[2,8,32], index: 10, kind: output, shape index: {}]
  %s11 = sld [smem:[#allocation0]]
  $region66: #{fwd.1} parent=0
    _
  %s13 = ssub.s32 1, %s11
  %s14 = scalar_select 0, %s13, %s11
  $region1: #{fwd.1} parent=0
    #allocation2 [shape = 'u8[16384]{0}', space=vmem, size = 0x4000, scoped, tag = 'input window, operand 2, single buffered']
    #allocation3 [shape = 's32[1]{0}', space=sflag, size = 0x4, scoped, tag = 'scoped memory for fwd.1']
    #allocation4 [shape = 'u8[16384]{0}', space=vmem, size = 0x4000, scoped, tag = 'input window, operand 3, single buffered']
    #allocation5 [shape = 's32[1]{0}', space=sflag, size = 0x4, scoped, tag = 'scoped memory for fwd.1']
    #allocation6 [shape = 'u8[512]{0}', space=vmem, size = 0x400, scoped, tag = 'input window, operand 4, single buffered']
    #allocation7 [shape = 'u8[4096]{0}', space=vmem, size = 0x1000, scoped, tag = 'input window, operand 9, single buffered']
    #allocation8 [shape = 's32[1]{0}', space=sflag, size = 0x4, scoped, tag = 'scoped memory for fwd.1']
    %15 = vsyncpa [#allocation3], 0
    %16 = vsyncpa [#allocation5], 0
    %17 = vsyncpa [#allocation8], 0
    // Predicated region
    $region2: #{fwd.1} parent=1 // pred_check
      _
    $region3: #{fwd.1} parent=1 // pred_check_branch
      %19 = sbr.rel (0) target = $region5
    $region4: #{fwd.1} parent=1 // pred_region
      _
    $region5: #{fwd.1} parent=1 // pred_fallthru
      _
    // Predicated region
    $region6: #{fwd.1} parent=1 // pred_check
      _
    $region7: #{fwd.1} parent=1 // pred_check_branch
      %21 = sbr.rel (0) target = $region9
    $region8: #{fwd.1} parent=1 // pred_region
      _
    $region9: #{fwd.1} parent=1 // pred_fallthru
      _
    // Predicated region
    $region10: #{fwd.1} parent=1 // pred_check
      _
    $region11: #{fwd.1} parent=1 // pred_check_branch
      %23 = sbr.rel (0) target = $region13
    $region12: #{fwd.1} parent=1 // pred_region
      %s25 = ssub.s32 512, 512
      %26 = vsyncadd [#allocation3], %s25
      %s27 = sshll.u32 [#allocation2], 4
      %s28 = int_to_ptr.vmem [resolvable:$true] %s27
      %33 = dma.hbm_to_vmem [thread:$0]  %s2, 512, %s28, [#allocation3], 128, 128, 8
    $region13: #{fwd.1} parent=1 // pred_fallthru
      _
    // Predicated region
    $region14: #{fwd.1} parent=1 // pred_check
      _
    $region15: #{fwd.1} parent=1 // pred_check_branch
      %35 = sbr.rel (0) target = $region17
    $region16: #{fwd.1} parent=1 // pred_region
      %s37 = ssub.s32 512, 512
      %38 = vsyncadd [#allocation5], %s37
      %s39 = sshll.u32 [#allocation4], 4
      %s40 = int_to_ptr.vmem [resolvable:$true] %s39
      %45 = dma.hbm_to_vmem [thread:$0]  %s3, 512, %s40, [#allocation5], 128, 128, 8
    $region17: #{fwd.1} parent=1 // pred_fallthru
      _
    // Predicated region
    $region18: #{fwd.1} parent=1 // pred_check
      _
    $region19: #{fwd.1} parent=1 // pred_check_branch
      %47 = sbr.rel (0) target = $region21
    $region20: #{fwd.1} parent=1 // pred_region
      %s49 = ssub.s32 16, 16
      %50 = vsyncadd [#allocation5], %s49
      %s52 = sshll.u32 [#allocation6], 4
      %s53 = int_to_ptr.vmem [resolvable:$true] %s52
      %55 = dma.hbm_to_vmem [thread:$0]  %s4, 16, %s53, [#allocation5]
    $region21: #{fwd.1} parent=1 // pred_fallthru
      _
    // Predicated region
    $region22: #{fwd.1} parent=1 // pred_check
      _
    $region23: #{fwd.1} parent=1 // pred_check_branch
      %57 = sbr.rel (0) target = $region25
    $region24: #{fwd.1} parent=1 // pred_region
      _
    $region25: #{fwd.1} parent=1 // pred_fallthru
      _
    // Predicated region
    $region26: #{fwd.1} parent=1 // pred_check
      _
    $region27: #{fwd.1} parent=1 // pred_check_branch
      %59 = sbr.rel (0) target = $region29
    $region28: #{fwd.1} parent=1 // pred_region
      _
    $region29: #{fwd.1} parent=1 // pred_fallthru
      _
    // Predicated region
    $region30: #{fwd.1} parent=1 // pred_check
      _
    $region31: #{fwd.1} parent=1 // pred_check_branch
      %61 = sbr.rel (0) target = $region33
    $region32: #{fwd.1} parent=1 // pred_region
      _
    $region33: #{fwd.1} parent=1 // pred_fallthru
      _
    // Predicated region
    $region34: #{fwd.1} parent=1 // pred_check
      _
    $region35: #{fwd.1} parent=1 // pred_check_branch
      %63 = sbr.rel (0) target = $region37
    $region36: #{fwd.1} parent=1 // pred_region
      _
    $region37: #{fwd.1} parent=1 // pred_fallthru
      _
    // Predicated region
    $region38: #{fwd.1} parent=1 // pred_check
      _
    $region39: #{fwd.1} parent=1 // pred_check_branch
      %65 = sbr.rel (0) target = $region41
    $region40: #{fwd.1} parent=1 // pred_region
      %s67 = ssub.s32 128, 128
      %68 = vsyncadd [#allocation8], %s67
      %s70 = sshll.u32 [#allocation7], 4
      %s71 = int_to_ptr.vmem [resolvable:$true] %s70
      %73 = dma.hbm_to_vmem [thread:$0]  %s9, 128, %s71, [#allocation8]
    $region41: #{fwd.1} parent=1 // pred_fallthru
      _
    // Predicated region
    $region42: #{fwd.1} parent=1 // pred_check
      _
    $region43: #{fwd.1} parent=1 // pred_check_branch
      %75 = sbr.rel (0) target = $region45
    $region44: #{fwd.1} parent=1 // pred_region
      %76 = dma.done [#allocation3], 512
    $region45: #{fwd.1} parent=1 // pred_fallthru
      _
    // Predicated region
    $region46: #{fwd.1} parent=1 // pred_check
      _
    $region47: #{fwd.1} parent=1 // pred_check_branch
      %78 = sbr.rel (0) target = $region49
    $region48: #{fwd.1} parent=1 // pred_region
      %79 = dma.done [#allocation5], 512
    $region49: #{fwd.1} parent=1 // pred_fallthru
      _
    // Predicated region
    $region50: #{fwd.1} parent=1 // pred_check
      _
    $region51: #{fwd.1} parent=1 // pred_check_branch
      %81 = sbr.rel (0) target = $region53
    $region52: #{fwd.1} parent=1 // pred_region
      %82 = dma.done [#allocation5], 16
    $region53: #{fwd.1} parent=1 // pred_fallthru
      _
    // Predicated region
    $region54: #{fwd.1} parent=1 // pred_check
      _
    $region55: #{fwd.1} parent=1 // pred_check_branch
      %84 = sbr.rel (0) target = $region57
    $region56: #{fwd.1} parent=1 // pred_region
      %85 = dma.done [#allocation8], 128
    $region57: #{fwd.1} parent=1 // pred_fallthru
      _
    %v87 = vld [vmem:[#allocation7] sm:$0x7f]
    %v88 = vld [vmem:[%s0] sm:$0xff]
    %v89 = vld [vmem:[%s0 + $0x8] sm:$0xff]
    %v90 = vld [vmem:[%s1] sm:$0xff]
    %v91 = vld [vmem:[%s1 + $0x8] sm:$0xff]
    %v92 = vld [vmem:[#allocation2] sm:$0xff]
    %v93 = vld [vmem:[#allocation2 + $0x8] sm:$0xff]
    %v94 = vld [vmem:[#allocation2 + $0x10] sm:$0xff]
    %v95 = vld [vmem:[#allocation2 + $0x18] sm:$0xff]
    %v96 = vlaneseq
    %v97 = vshrl.u32 %v96, 7
    %v98 = vsub.s32 0, %v97
    %v99 = vrot.slane %v87, %v98
    %vm100 = vcmask 261120
    %v102 = vsel %vm100, %v88, 0
    %v105 = vsel %vm100, %v89, 0
    %107 = vmatprep.subr.mxu0 0.0
    %108 = vmatpush1.msra.mxu0 %v92
    %109 = vmatprep.subr.mxu0 0.0
    %110 = vmatpush1.msra.mxu0 %v93
    %111 = vmatprep.subr.mxu0 0.0
    %112 = vmatpush1.msra.mxu0 %v94
    %113 = vmatprep.subr.mxu0 0.0
    %114 = vmatpush1.msra.mxu0 %v95
    %115 = vmatprep.subr.mxu0 0.0
    %116 = vmatpush1.msra.mxu0 0.0
    %117 = vmatprep.subr.mxu0 0.0
    %118 = vmatpush1.msra.mxu0 0.0
    %119 = vmatprep.subr.mxu0 0.0
    %120 = vmatpush1.msra.mxu0 0.0
    %121 = vmatprep.subr.mxu0 0.0
    %122 = vmatpush1.msra.mxu0 0.0
    %123 = vmatprep.subr.mxu0 0.0
    %124 = vmatpush1.msra.mxu0 0.0
    %125 = vmatprep.subr.mxu0 0.0
    %126 = vmatpush1.msra.mxu0 0.0
    %127 = vmatprep.subr.mxu0 0.0
    %128 = vmatpush1.msra.mxu0 0.0
    %129 = vmatprep.subr.mxu0 0.0
    %130 = vmatpush1.msra.mxu0 0.0
    %131 = vmatprep.subr.mxu0 0.0
    %132 = vmatpush1.msra.mxu0 0.0
    %133 = vmatprep.subr.mxu0 0.0
    %134 = vmatpush1.msra.mxu0 0.0
    %135 = vmatprep.subr.mxu0 0.0
    %136 = vmatpush1.msra.mxu0 0.0
    %137 = vmatprep.subr.mxu0 0.0
    %138 = vmatpush1.msra.mxu0 0.0
    %139 = vmatprep.subr.mxu0 0.0
    %140 = vmatpush1.msra.mxu0 0.0
    %141 = vmatprep.subr.mxu0 0.0
    %142 = vmatpush1.msra.mxu0 0.0
    %143 = vmatprep.subr.mxu0 0.0
    %144 = vmatpush1.msra.mxu0 0.0
    %145 = vmatprep.subr.mxu0 0.0
    %146 = vmatpush1.msra.mxu0 0.0
    %147 = vmatprep.subr.mxu0 0.0
    %148 = vmatpush1.msra.mxu0 0.0
    %149 = vmatprep.subr.mxu0 0.0
    %150 = vmatpush1.msra.mxu0 0.0
    %151 = vmatprep.subr.mxu0 0.0
    %152 = vmatpush1.msra.mxu0 0.0
    %153 = vmatprep.subr.mxu0 0.0
    %154 = vmatpush1.msra.mxu0 0.0
    %155 = vmatprep.subr.mxu0 0.0
    %156 = vmatpush1.msra.mxu0 0.0
    %157 = vmatprep.subr.mxu0 0.0
    %158 = vmatpush1.msra.mxu0 0.0
    %159 = vmatprep.subr.mxu0 0.0
    %160 = vmatpush1.msra.mxu0 0.0
    %161 = vmatprep.subr.mxu0 0.0
    %162 = vmatpush1.msra.mxu0 0.0
    %163 = vmatprep.subr.mxu0 0.0
    %164 = vmatpush1.msra.mxu0 0.0
    %165 = vmatprep.subr.mxu0 0.0
    %166 = vmatpush1.msra.mxu0 0.0
    %167 = vmatprep.subr.mxu0 0.0
    %168 = vmatpush1.msra.mxu0 0.0
    %169 = vmatprep.subr.mxu0 0.0
    %170 = vmatpush1.msra.mxu0 0.0
    %171 = vmatprep.mubr.f32.mxu0 0.0
    %172 = vmatmul.mubr.f32.gmra.mrb[0].mxu0 %v102
    %v173 = vpop.f32.mrb[0].mxu0
    %v174 = vadd.f32 %v99, %v173
    %v175 = vpop.f32.mrb[0].mxu0
    %176 = vmatprep.mubr.f32.mxu0 0.0
    %177 = vmatmul.mubr.f32.gmra.mrb[0].mxu0 %v105
    %v178 = vpop.f32.mrb[0].mxu0
    %v179 = vadd.f32 %v99, %v178
    %v180 = vpop.f32.mrb[0].mxu0
    %181 = vdwg.mxu0
    %v182 = vld [vmem:[#allocation4] sm:$0xff]
    %v183 = vld [vmem:[#allocation4 + $0x8] sm:$0xff]
    %v184 = vld [vmem:[#allocation4 + $0x10] sm:$0xff]
    %v185 = vld [vmem:[#allocation4 + $0x18] sm:$0xff]
    %v186 = vld [vmem:[#allocation6] sm:$0x1]
    %v188 = vlaneseq
    %v189 = vshrl.u32 %v188, 7
    %v190 = vsub.s32 0, %v189
    %v191 = vrot.slane %v186, %v190
    %v194 = vsel %vm100, %v90, 0
    %v197 = vsel %vm100, %v91, 0
    %199 = vmatprep.subr.mxu0 0.0
    %200 = vmatpush1.msra.mxu0 %v182
    %201 = vmatprep.subr.mxu0 0.0
    %202 = vmatpush1.msra.mxu0 %v183
    %203 = vmatprep.subr.mxu0 0.0
    %204 = vmatpush1.msra.mxu0 %v184
    %205 = vmatprep.subr.mxu0 0.0
    %206 = vmatpush1.msra.mxu0 %v185
    %207 = vmatprep.subr.mxu0 0.0
    %208 = vmatpush1.msra.mxu0 0.0
    %209 = vmatprep.subr.mxu0 0.0
    %210 = vmatpush1.msra.mxu0 0.0
    %211 = vmatprep.subr.mxu0 0.0
    %212 = vmatpush1.msra.mxu0 0.0
    %213 = vmatprep.subr.mxu0 0.0
    %214 = vmatpush1.msra.mxu0 0.0
    %215 = vmatprep.subr.mxu0 0.0
    %216 = vmatpush1.msra.mxu0 0.0
    %217 = vmatprep.subr.mxu0 0.0
    %218 = vmatpush1.msra.mxu0 0.0
    %219 = vmatprep.subr.mxu0 0.0
    %220 = vmatpush1.msra.mxu0 0.0
    %221 = vmatprep.subr.mxu0 0.0
    %222 = vmatpush1.msra.mxu0 0.0
    %223 = vmatprep.subr.mxu0 0.0
    %224 = vmatpush1.msra.mxu0 0.0
    %225 = vmatprep.subr.mxu0 0.0
    %226 = vmatpush1.msra.mxu0 0.0
    %227 = vmatprep.subr.mxu0 0.0
    %228 = vmatpush1.msra.mxu0 0.0
    %229 = vmatprep.subr.mxu0 0.0
    %230 = vmatpush1.msra.mxu0 0.0
    %231 = vmatprep.subr.mxu0 0.0
    %232 = vmatpush1.msra.mxu0 0.0
    %233 = vmatprep.subr.mxu0 0.0
    %234 = vmatpush1.msra.mxu0 0.0
    %235 = vmatprep.subr.mxu0 0.0
    %236 = vmatpush1.msra.mxu0 0.0
    %237 = vmatprep.subr.mxu0 0.0
    %238 = vmatpush1.msra.mxu0 0.0
    %239 = vmatprep.subr.mxu0 0.0
    %240 = vmatpush1.msra.mxu0 0.0
    %241 = vmatprep.subr.mxu0 0.0
    %242 = vmatpush1.msra.mxu0 0.0
    %243 = vmatprep.subr.mxu0 0.0
    %244 = vmatpush1.msra.mxu0 0.0
    %245 = vmatprep.subr.mxu0 0.0
    %246 = vmatpush1.msra.mxu0 0.0
    %247 = vmatprep.subr.mxu0 0.0
    %248 = vmatpush1.msra.mxu0 0.0
    %249 = vmatprep.subr.mxu0 0.0
    %250 = vmatpush1.msra.mxu0 0.0
    %251 = vmatprep.subr.mxu0 0.0
    %252 = vmatpush1.msra.mxu0 0.0
    %253 = vmatprep.subr.mxu0 0.0
    %254 = vmatpush1.msra.mxu0 0.0
    %255 = vmatprep.subr.mxu0 0.0
    %256 = vmatpush1.msra.mxu0 0.0
    %257 = vmatprep.subr.mxu0 0.0
    %258 = vmatpush1.msra.mxu0 0.0
    %259 = vmatprep.subr.mxu0 0.0
    %260 = vmatpush1.msra.mxu0 0.0
    %261 = vmatprep.subr.mxu0 0.0
    %262 = vmatpush1.msra.mxu0 0.0
    %263 = vmatprep.mubr.f32.mxu0 0.0
    %264 = vmatmul.mubr.f32.gmra.mrb[0].mxu0 %v194
    %v265 = vpop.f32.mrb[0].mxu0
    %v266 = vadd.f32 %v191, %v265
    %v267 = vpop.f32.mrb[0].mxu0
    %268 = vmatprep.mubr.f32.mxu0 0.0
    %269 = vmatmul.mubr.f32.gmra.mrb[0].mxu0 %v197
    %v270 = vpop.f32.mrb[0].mxu0
    %v271 = vadd.f32 %v191, %v270
    %v272 = vpop.f32.mrb[0].mxu0
    %273 = vdwg.mxu0
    %276 = vrot.lane.b32.xlu0 %v174, 120
    %v277 = vpop.permute.xlu0 %276
    %278 = vrot.lane.b32.xlu0 %v179, 120
    %v279 = vpop.permute.xlu0 %278
    %280 = vrot.lane.b32.xlu0 %v174, 112
    %v281 = vpop.permute.xlu0 %280
    %282 = vrot.lane.b32.xlu0 %v179, 112
    %v283 = vpop.permute.xlu0 %282
    %284 = vrot.lane.b32.xlu0 %v174, 104
    %v285 = vpop.permute.xlu0 %284
    %286 = vrot.lane.b32.xlu0 %v179, 104
    %v287 = vpop.permute.xlu0 %286
    %290 = vrot.lane.b32.xlu0 %v266, 120
    %v291 = vpop.permute.xlu0 %290
    %292 = vrot.lane.b32.xlu0 %v271, 120
    %v293 = vpop.permute.xlu0 %292
    %294 = vrot.lane.b32.xlu0 %v266, 112
    %v295 = vpop.permute.xlu0 %294
    %296 = vrot.lane.b32.xlu0 %v271, 112
    %v297 = vpop.permute.xlu0 %296
    %298 = vrot.lane.b32.xlu0 %v266, 104
    %v299 = vpop.permute.xlu0 %298
    %300 = vrot.lane.b32.xlu0 %v271, 104
    %v301 = vpop.permute.xlu0 %300
    %vm302 = vcmask 64512
    %v303 = vsel %vm302, %v174, 0
    %v305 = vsel %vm302, %v266, 0
    %307 = vmatprep.subr.mxu0 0.0
    %308 = vmatpush1.xpose.msra.mxu0 %v305
    %309 = vmatprep.subr.mxu0 0.0
    %310 = vmatpush1.xpose.msra.mxu0 0.0
    %311 = vmatprep.subr.mxu0 0.0
    %312 = vmatpush1.xpose.msra.mxu0 0.0
    %313 = vmatprep.subr.mxu0 0.0
    %314 = vmatpush1.xpose.msra.mxu0 0.0
    %315 = vmatprep.subr.mxu0 0.0
    %316 = vmatpush1.xpose.msra.mxu0 0.0
    %317 = vmatprep.subr.mxu0 0.0
    %318 = vmatpush1.xpose.msra.mxu0 0.0
    %319 = vmatprep.subr.mxu0 0.0
    %320 = vmatpush1.xpose.msra.mxu0 0.0
    %321 = vmatprep.subr.mxu0 0.0
    %322 = vmatpush1.xpose.msra.mxu0 0.0
    %323 = vmatprep.subr.mxu0 0.0
    %324 = vmatpush1.xpose.msra.mxu0 0.0
    %325 = vmatprep.subr.mxu0 0.0
    %326 = vmatpush1.xpose.msra.mxu0 0.0
    %327 = vmatprep.subr.mxu0 0.0
    %328 = vmatpush1.xpose.msra.mxu0 0.0
    %329 = vmatprep.subr.mxu0 0.0
    %330 = vmatpush1.xpose.msra.mxu0 0.0
    %331 = vmatprep.subr.mxu0 0.0
    %332 = vmatpush1.xpose.msra.mxu0 0.0
    %333 = vmatprep.subr.mxu0 0.0
    %334 = vmatpush1.xpose.msra.mxu0 0.0
    %335 = vmatprep.subr.mxu0 0.0
    %336 = vmatpush1.xpose.msra.mxu0 0.0
    %337 = vmatprep.subr.mxu0 0.0
    %338 = vmatpush1.xpose.msra.mxu0 0.0
    %339 = vmatprep.subr.mxu0 0.0
    %340 = vmatpush1.xpose.msra.mxu0 0.0
    %341 = vmatprep.subr.mxu0 0.0
    %342 = vmatpush1.xpose.msra.mxu0 0.0
    %343 = vmatprep.subr.mxu0 0.0
    %344 = vmatpush1.xpose.msra.mxu0 0.0
    %345 = vmatprep.subr.mxu0 0.0
    %346 = vmatpush1.xpose.msra.mxu0 0.0
    %347 = vmatprep.subr.mxu0 0.0
    %348 = vmatpush1.xpose.msra.mxu0 0.0
    %349 = vmatprep.subr.mxu0 0.0
    %350 = vmatpush1.xpose.msra.mxu0 0.0
    %351 = vmatprep.subr.mxu0 0.0
    %352 = vmatpush1.xpose.msra.mxu0 0.0
    %353 = vmatprep.subr.mxu0 0.0
    %354 = vmatpush1.xpose.msra.mxu0 0.0
    %355 = vmatprep.subr.mxu0 0.0
    %356 = vmatpush1.xpose.msra.mxu0 0.0
    %357 = vmatprep.subr.mxu0 0.0
    %358 = vmatpush1.xpose.msra.mxu0 0.0
    %359 = vmatprep.subr.mxu0 0.0
    %360 = vmatpush1.xpose.msra.mxu0 0.0
    %361 = vmatprep.subr.mxu0 0.0
    %362 = vmatpush1.xpose.msra.mxu0 0.0
    %363 = vmatprep.subr.mxu0 0.0
    %364 = vmatpush1.xpose.msra.mxu0 0.0
    %365 = vmatprep.subr.mxu0 0.0
    %366 = vmatpush1.xpose.msra.mxu0 0.0
    %367 = vmatprep.subr.mxu0 0.0
    %368 = vmatpush1.xpose.msra.mxu0 0.0
    %369 = vmatprep.subr.mxu0 0.0
    %370 = vmatpush1.xpose.msra.mxu0 0.0
    %371 = vmatprep.mubr.f32.mxu0 0.0
    %372 = vmatmul.mubr.f32.gmra.mrb[0].mxu0 %v303
    %v373 = vpop.f32.mrb[0].mxu0
    %v374 = vadd.f32 0.0, %v373
    %v375 = vpop.f32.mrb[0].mxu0
    %376 = vdwg.mxu0
    %v377 = vsel %vm302, %v179, 0
    %v379 = vsel %vm302, %v271, 0
    %381 = vmatprep.subr.mxu0 0.0
    %382 = vmatpush1.xpose.msra.mxu0 %v379
    %383 = vmatprep.subr.mxu0 0.0
    %384 = vmatpush1.xpose.msra.mxu0 0.0
    %385 = vmatprep.subr.mxu0 0.0
    %386 = vmatpush1.xpose.msra.mxu0 0.0
    %387 = vmatprep.subr.mxu0 0.0
    %388 = vmatpush1.xpose.msra.mxu0 0.0
    %389 = vmatprep.subr.mxu0 0.0
    %390 = vmatpush1.xpose.msra.mxu0 0.0
    %391 = vmatprep.subr.mxu0 0.0
    %392 = vmatpush1.xpose.msra.mxu0 0.0
    %393 = vmatprep.subr.mxu0 0.0
    %394 = vmatpush1.xpose.msra.mxu0 0.0
    %395 = vmatprep.subr.mxu0 0.0
    %396 = vmatpush1.xpose.msra.mxu0 0.0
    %397 = vmatprep.subr.mxu0 0.0
    %398 = vmatpush1.xpose.msra.mxu0 0.0
    %399 = vmatprep.subr.mxu0 0.0
    %400 = vmatpush1.xpose.msra.mxu0 0.0
    %401 = vmatprep.subr.mxu0 0.0
    %402 = vmatpush1.xpose.msra.mxu0 0.0
    %403 = vmatprep.subr.mxu0 0.0
    %404 = vmatpush1.xpose.msra.mxu0 0.0
    %405 = vmatprep.subr.mxu0 0.0
    %406 = vmatpush1.xpose.msra.mxu0 0.0
    %407 = vmatprep.subr.mxu0 0.0
    %408 = vmatpush1.xpose.msra.mxu0 0.0
    %409 = vmatprep.subr.mxu0 0.0
    %410 = vmatpush1.xpose.msra.mxu0 0.0
    %411 = vmatprep.subr.mxu0 0.0
    %412 = vmatpush1.xpose.msra.mxu0 0.0
    %413 = vmatprep.subr.mxu0 0.0
    %414 = vmatpush1.xpose.msra.mxu0 0.0
    %415 = vmatprep.subr.mxu0 0.0
    %416 = vmatpush1.xpose.msra.mxu0 0.0
    %417 = vmatprep.subr.mxu0 0.0
    %418 = vmatpush1.xpose.msra.mxu0 0.0
    %419 = vmatprep.subr.mxu0 0.0
    %420 = vmatpush1.xpose.msra.mxu0 0.0
    %421 = vmatprep.subr.mxu0 0.0
    %422 = vmatpush1.xpose.msra.mxu0 0.0
    %423 = vmatprep.subr.mxu0 0.0
    %424 = vmatpush1.xpose.msra.mxu0 0.0
    %425 = vmatprep.subr.mxu0 0.0
    %426 = vmatpush1.xpose.msra.mxu0 0.0
    %427 = vmatprep.subr.mxu0 0.0
    %428 = vmatpush1.xpose.msra.mxu0 0.0
    %429 = vmatprep.subr.mxu0 0.0
    %430 = vmatpush1.xpose.msra.mxu0 0.0
    %431 = vmatprep.subr.mxu0 0.0
    %432 = vmatpush1.xpose.msra.mxu0 0.0
    %433 = vmatprep.subr.mxu0 0.0
    %434 = vmatpush1.xpose.msra.mxu0 0.0
    %435 = vmatprep.subr.mxu0 0.0
    %436 = vmatpush1.xpose.msra.mxu0 0.0
    %437 = vmatprep.subr.mxu0 0.0
    %438 = vmatpush1.xpose.msra.mxu0 0.0
    %439 = vmatprep.subr.mxu0 0.0
    %440 = vmatpush1.xpose.msra.mxu0 0.0
    %441 = vmatprep.subr.mxu0 0.0
    %442 = vmatpush1.xpose.msra.mxu0 0.0
    %443 = vmatprep.subr.mxu0 0.0
    %444 = vmatpush1.xpose.msra.mxu0 0.0
    %445 = vmatprep.mubr.f32.mxu0 0.0
    %446 = vmatmul.mubr.f32.gmra.mrb[0].mxu0 %v377
    %v447 = vpop.f32.mrb[0].mxu0
    %v448 = vadd.f32 0.0, %v447
    %v449 = vpop.f32.mrb[0].mxu0
    %450 = vdwg.mxu0
    %v451 = vsel %vm302, %v277, 0
    %v453 = vsel %vm302, %v291, 0
    %455 = vmatprep.subr.mxu0 0.0
    %456 = vmatpush1.xpose.msra.mxu0 %v453
    %457 = vmatprep.subr.mxu0 0.0
    %458 = vmatpush1.xpose.msra.mxu0 0.0
    %459 = vmatprep.subr.mxu0 0.0
    %460 = vmatpush1.xpose.msra.mxu0 0.0
    %461 = vmatprep.subr.mxu0 0.0
    %462 = vmatpush1.xpose.msra.mxu0 0.0
    %463 = vmatprep.subr.mxu0 0.0
    %464 = vmatpush1.xpose.msra.mxu0 0.0
    %465 = vmatprep.subr.mxu0 0.0
    %466 = vmatpush1.xpose.msra.mxu0 0.0
    %467 = vmatprep.subr.mxu0 0.0
    %468 = vmatpush1.xpose.msra.mxu0 0.0
    %469 = vmatprep.subr.mxu0 0.0
    %470 = vmatpush1.xpose.msra.mxu0 0.0
    %471 = vmatprep.subr.mxu0 0.0
    %472 = vmatpush1.xpose.msra.mxu0 0.0
    %473 = vmatprep.subr.mxu0 0.0
    %474 = vmatpush1.xpose.msra.mxu0 0.0
    %475 = vmatprep.subr.mxu0 0.0
    %476 = vmatpush1.xpose.msra.mxu0 0.0
    %477 = vmatprep.subr.mxu0 0.0
    %478 = vmatpush1.xpose.msra.mxu0 0.0
    %479 = vmatprep.subr.mxu0 0.0
    %480 = vmatpush1.xpose.msra.mxu0 0.0
    %481 = vmatprep.subr.mxu0 0.0
    %482 = vmatpush1.xpose.msra.mxu0 0.0
    %483 = vmatprep.subr.mxu0 0.0
    %484 = vmatpush1.xpose.msra.mxu0 0.0
    %485 = vmatprep.subr.mxu0 0.0
    %486 = vmatpush1.xpose.msra.mxu0 0.0
    %487 = vmatprep.subr.mxu0 0.0
    %488 = vmatpush1.xpose.msra.mxu0 0.0
    %489 = vmatprep.subr.mxu0 0.0
    %490 = vmatpush1.xpose.msra.mxu0 0.0
    %491 = vmatprep.subr.mxu0 0.0
    %492 = vmatpush1.xpose.msra.mxu0 0.0
    %493 = vmatprep.subr.mxu0 0.0
    %494 = vmatpush1.xpose.msra.mxu0 0.0
    %495 = vmatprep.subr.mxu0 0.0
    %496 = vmatpush1.xpose.msra.mxu0 0.0
    %497 = vmatprep.subr.mxu0 0.0
    %498 = vmatpush1.xpose.msra.mxu0 0.0
    %499 = vmatprep.subr.mxu0 0.0
    %500 = vmatpush1.xpose.msra.mxu0 0.0
    %501 = vmatprep.subr.mxu0 0.0
    %502 = vmatpush1.xpose.msra.mxu0 0.0
    %503 = vmatprep.subr.mxu0 0.0
    %504 = vmatpush1.xpose.msra.mxu0 0.0
    %505 = vmatprep.subr.mxu0 0.0
    %506 = vmatpush1.xpose.msra.mxu0 0.0
    %507 = vmatprep.subr.mxu0 0.0
    %508 = vmatpush1.xpose.msra.mxu0 0.0
    %509 = vmatprep.subr.mxu0 0.0
    %510 = vmatpush1.xpose.msra.mxu0 0.0
    %511 = vmatprep.subr.mxu0 0.0
    %512 = vmatpush1.xpose.msra.mxu0 0.0
    %513 = vmatprep.subr.mxu0 0.0
    %514 = vmatpush1.xpose.msra.mxu0 0.0
    %515 = vmatprep.subr.mxu0 0.0
    %516 = vmatpush1.xpose.msra.mxu0 0.0
    %517 = vmatprep.subr.mxu0 0.0
    %518 = vmatpush1.xpose.msra.mxu0 0.0
    %519 = vmatprep.mubr.f32.mxu0 0.0
    %520 = vmatmul.mubr.f32.gmra.mrb[0].mxu0 %v451
    %v521 = vpop.f32.mrb[0].mxu0
    %v522 = vadd.f32 0.0, %v521
    %v523 = vpop.f32.mrb[0].mxu0
    %524 = vdwg.mxu0
    %v525 = vsel %vm302, %v279, 0
    %v527 = vsel %vm302, %v293, 0
    %529 = vmatprep.subr.mxu0 0.0
    %530 = vmatpush1.xpose.msra.mxu0 %v527
    %531 = vmatprep.subr.mxu0 0.0
    %532 = vmatpush1.xpose.msra.mxu0 0.0
    %533 = vmatprep.subr.mxu0 0.0
    %534 = vmatpush1.xpose.msra.mxu0 0.0
    %535 = vmatprep.subr.mxu0 0.0
    %536 = vmatpush1.xpose.msra.mxu0 0.0
    %537 = vmatprep.subr.mxu0 0.0
    %538 = vmatpush1.xpose.msra.mxu0 0.0
    %539 = vmatprep.subr.mxu0 0.0
    %540 = vmatpush1.xpose.msra.mxu0 0.0
    %541 = vmatprep.subr.mxu0 0.0
    %542 = vmatpush1.xpose.msra.mxu0 0.0
    %543 = vmatprep.subr.mxu0 0.0
    %544 = vmatpush1.xpose.msra.mxu0 0.0
    %545 = vmatprep.subr.mxu0 0.0
    %546 = vmatpush1.xpose.msra.mxu0 0.0
    %547 = vmatprep.subr.mxu0 0.0
    %548 = vmatpush1.xpose.msra.mxu0 0.0
    %549 = vmatprep.subr.mxu0 0.0
    %550 = vmatpush1.xpose.msra.mxu0 0.0
    %551 = vmatprep.subr.mxu0 0.0
    %552 = vmatpush1.xpose.msra.mxu0 0.0
    %553 = vmatprep.subr.mxu0 0.0
    %554 = vmatpush1.xpose.msra.mxu0 0.0
    %555 = vmatprep.subr.mxu0 0.0
    %556 = vmatpush1.xpose.msra.mxu0 0.0
    %557 = vmatprep.subr.mxu0 0.0
    %558 = vmatpush1.xpose.msra.mxu0 0.0
    %559 = vmatprep.subr.mxu0 0.0
    %560 = vmatpush1.xpose.msra.mxu0 0.0
    %561 = vmatprep.subr.mxu0 0.0
    %562 = vmatpush1.xpose.msra.mxu0 0.0
    %563 = vmatprep.subr.mxu0 0.0
    %564 = vmatpush1.xpose.msra.mxu0 0.0
    %565 = vmatprep.subr.mxu0 0.0
    %566 = vmatpush1.xpose.msra.mxu0 0.0
    %567 = vmatprep.subr.mxu0 0.0
    %568 = vmatpush1.xpose.msra.mxu0 0.0
    %569 = vmatprep.subr.mxu0 0.0
    %570 = vmatpush1.xpose.msra.mxu0 0.0
    %571 = vmatprep.subr.mxu0 0.0
    %572 = vmatpush1.xpose.msra.mxu0 0.0
    %573 = vmatprep.subr.mxu0 0.0
    %574 = vmatpush1.xpose.msra.mxu0 0.0
    %575 = vmatprep.subr.mxu0 0.0
    %576 = vmatpush1.xpose.msra.mxu0 0.0
    %577 = vmatprep.subr.mxu0 0.0
    %578 = vmatpush1.xpose.msra.mxu0 0.0
    %579 = vmatprep.subr.mxu0 0.0
    %580 = vmatpush1.xpose.msra.mxu0 0.0
    %581 = vmatprep.subr.mxu0 0.0
    %582 = vmatpush1.xpose.msra.mxu0 0.0
    %583 = vmatprep.subr.mxu0 0.0
    %584 = vmatpush1.xpose.msra.mxu0 0.0
    %585 = vmatprep.subr.mxu0 0.0
    %586 = vmatpush1.xpose.msra.mxu0 0.0
    %587 = vmatprep.subr.mxu0 0.0
    %588 = vmatpush1.xpose.msra.mxu0 0.0
    %589 = vmatprep.subr.mxu0 0.0
    %590 = vmatpush1.xpose.msra.mxu0 0.0
    %591 = vmatprep.subr.mxu0 0.0
    %592 = vmatpush1.xpose.msra.mxu0 0.0
    %593 = vmatprep.mubr.f32.mxu0 0.0
    %594 = vmatmul.mubr.f32.gmra.mrb[0].mxu0 %v525
    %v595 = vpop.f32.mrb[0].mxu0
    %v596 = vadd.f32 0.0, %v595
    %v597 = vpop.f32.mrb[0].mxu0
    %598 = vdwg.mxu0
    %v599 = vsel %vm302, %v281, 0
    %v601 = vsel %vm302, %v295, 0
    %603 = vmatprep.subr.mxu0 0.0
    %604 = vmatpush1.xpose.msra.mxu0 %v601
    %605 = vmatprep.subr.mxu0 0.0
    %606 = vmatpush1.xpose.msra.mxu0 0.0
    %607 = vmatprep.subr.mxu0 0.0
    %608 = vmatpush1.xpose.msra.mxu0 0.0
    %609 = vmatprep.subr.mxu0 0.0
    %610 = vmatpush1.xpose.msra.mxu0 0.0
    %611 = vmatprep.subr.mxu0 0.0
    %612 = vmatpush1.xpose.msra.mxu0 0.0
    %613 = vmatprep.subr.mxu0 0.0
    %614 = vmatpush1.xpose.msra.mxu0 0.0
    %615 = vmatprep.subr.mxu0 0.0
    %616 = vmatpush1.xpose.msra.mxu0 0.0
    %617 = vmatprep.subr.mxu0 0.0
    %618 = vmatpush1.xpose.msra.mxu0 0.0
    %619 = vmatprep.subr.mxu0 0.0
    %620 = vmatpush1.xpose.msra.mxu0 0.0
    %621 = vmatprep.subr.mxu0 0.0
    %622 = vmatpush1.xpose.msra.mxu0 0.0
    %623 = vmatprep.subr.mxu0 0.0
    %624 = vmatpush1.xpose.msra.mxu0 0.0
    %625 = vmatprep.subr.mxu0 0.0
    %626 = vmatpush1.xpose.msra.mxu0 0.0
    %627 = vmatprep.subr.mxu0 0.0
    %628 = vmatpush1.xpose.msra.mxu0 0.0
    %629 = vmatprep.subr.mxu0 0.0
    %630 = vmatpush1.xpose.msra.mxu0 0.0
    %631 = vmatprep.subr.mxu0 0.0
    %632 = vmatpush1.xpose.msra.mxu0 0.0
    %633 = vmatprep.subr.mxu0 0.0
    %634 = vmatpush1.xpose.msra.mxu0 0.0
    %635 = vmatprep.subr.mxu0 0.0
    %636 = vmatpush1.xpose.msra.mxu0 0.0
    %637 = vmatprep.subr.mxu0 0.0
    %638 = vmatpush1.xpose.msra.mxu0 0.0
    %639 = vmatprep.subr.mxu0 0.0
    %640 = vmatpush1.xpose.msra.mxu0 0.0
    %641 = vmatprep.subr.mxu0 0.0
    %642 = vmatpush1.xpose.msra.mxu0 0.0
    %643 = vmatprep.subr.mxu0 0.0
    %644 = vmatpush1.xpose.msra.mxu0 0.0
    %645 = vmatprep.subr.mxu0 0.0
    %646 = vmatpush1.xpose.msra.mxu0 0.0
    %647 = vmatprep.subr.mxu0 0.0
    %648 = vmatpush1.xpose.msra.mxu0 0.0
    %649 = vmatprep.subr.mxu0 0.0
    %650 = vmatpush1.xpose.msra.mxu0 0.0
    %651 = vmatprep.subr.mxu0 0.0
    %652 = vmatpush1.xpose.msra.mxu0 0.0
    %653 = vmatprep.subr.mxu0 0.0
    %654 = vmatpush1.xpose.msra.mxu0 0.0
    %655 = vmatprep.subr.mxu0 0.0
    %656 = vmatpush1.xpose.msra.mxu0 0.0
    %657 = vmatprep.subr.mxu0 0.0
    %658 = vmatpush1.xpose.msra.mxu0 0.0
    %659 = vmatprep.subr.mxu0 0.0
    %660 = vmatpush1.xpose.msra.mxu0 0.0
    %661 = vmatprep.subr.mxu0 0.0
    %662 = vmatpush1.xpose.msra.mxu0 0.0
    %663 = vmatprep.subr.mxu0 0.0
    %664 = vmatpush1.xpose.msra.mxu0 0.0
    %665 = vmatprep.subr.mxu0 0.0
    %666 = vmatpush1.xpose.msra.mxu0 0.0
    %667 = vmatprep.mubr.f32.mxu0 0.0
    %668 = vmatmul.mubr.f32.gmra.mrb[0].mxu0 %v599
    %v669 = vpop.f32.mrb[0].mxu0
    %v670 = vadd.f32 0.0, %v669
    %v671 = vpop.f32.mrb[0].mxu0
    %672 = vdwg.mxu0
    %v673 = vsel %vm302, %v283, 0
    %v675 = vsel %vm302, %v297, 0
    %677 = vmatprep.subr.mxu0 0.0
    %678 = vmatpush1.xpose.msra.mxu0 %v675
    %679 = vmatprep.subr.mxu0 0.0
    %680 = vmatpush1.xpose.msra.mxu0 0.0
    %681 = vmatprep.subr.mxu0 0.0
    %682 = vmatpush1.xpose.msra.mxu0 0.0
    %683 = vmatprep.subr.mxu0 0.0
    %684 = vmatpush1.xpose.msra.mxu0 0.0
    %685 = vmatprep.subr.mxu0 0.0
    %686 = vmatpush1.xpose.msra.mxu0 0.0
    %687 = vmatprep.subr.mxu0 0.0
    %688 = vmatpush1.xpose.msra.mxu0 0.0
    %689 = vmatprep.subr.mxu0 0.0
    %690 = vmatpush1.xpose.msra.mxu0 0.0
    %691 = vmatprep.subr.mxu0 0.0
    %692 = vmatpush1.xpose.msra.mxu0 0.0
    %693 = vmatprep.subr.mxu0 0.0
    %694 = vmatpush1.xpose.msra.mxu0 0.0
    %695 = vmatprep.subr.mxu0 0.0
    %696 = vmatpush1.xpose.msra.mxu0 0.0
    %697 = vmatprep.subr.mxu0 0.0
    %698 = vmatpush1.xpose.msra.mxu0 0.0
    %699 = vmatprep.subr.mxu0 0.0
    %700 = vmatpush1.xpose.msra.mxu0 0.0
    %701 = vmatprep.subr.mxu0 0.0
    %702 = vmatpush1.xpose.msra.mxu0 0.0
    %703 = vmatprep.subr.mxu0 0.0
    %704 = vmatpush1.xpose.msra.mxu0 0.0
    %705 = vmatprep.subr.mxu0 0.0
    %706 = vmatpush1.xpose.msra.mxu0 0.0
    %707 = vmatprep.subr.mxu0 0.0
    %708 = vmatpush1.xpose.msra.mxu0 0.0
    %709 = vmatprep.subr.mxu0 0.0
    %710 = vmatpush1.xpose.msra.mxu0 0.0
    %711 = vmatprep.subr.mxu0 0.0
    %712 = vmatpush1.xpose.msra.mxu0 0.0
    %713 = vmatprep.subr.mxu0 0.0
    %714 = vmatpush1.xpose.msra.mxu0 0.0
    %715 = vmatprep.subr.mxu0 0.0
    %716 = vmatpush1.xpose.msra.mxu0 0.0
    %717 = vmatprep.subr.mxu0 0.0
    %718 = vmatpush1.xpose.msra.mxu0 0.0
    %719 = vmatprep.subr.mxu0 0.0
    %720 = vmatpush1.xpose.msra.mxu0 0.0
    %721 = vmatprep.subr.mxu0 0.0
    %722 = vmatpush1.xpose.msra.mxu0 0.0
    %723 = vmatprep.subr.mxu0 0.0
    %724 = vmatpush1.xpose.msra.mxu0 0.0
    %725 = vmatprep.subr.mxu0 0.0
    %726 = vmatpush1.xpose.msra.mxu0 0.0
    %727 = vmatprep.subr.mxu0 0.0
    %728 = vmatpush1.xpose.msra.mxu0 0.0
    %729 = vmatprep.subr.mxu0 0.0
    %730 = vmatpush1.xpose.msra.mxu0 0.0
    %731 = vmatprep.subr.mxu0 0.0
    %732 = vmatpush1.xpose.msra.mxu0 0.0
    %733 = vmatprep.subr.mxu0 0.0
    %734 = vmatpush1.xpose.msra.mxu0 0.0
    %735 = vmatprep.subr.mxu0 0.0
    %736 = vmatpush1.xpose.msra.mxu0 0.0
    %737 = vmatprep.subr.mxu0 0.0
    %738 = vmatpush1.xpose.msra.mxu0 0.0
    %739 = vmatprep.subr.mxu0 0.0
    %740 = vmatpush1.xpose.msra.mxu0 0.0
    %741 = vmatprep.mubr.f32.mxu0 0.0
    %742 = vmatmul.mubr.f32.gmra.mrb[0].mxu0 %v673
    %v743 = vpop.f32.mrb[0].mxu0
    %v744 = vadd.f32 0.0, %v743
    %v745 = vpop.f32.mrb[0].mxu0
    %746 = vdwg.mxu0
    %v747 = vsel %vm302, %v285, 0
    %v749 = vsel %vm302, %v299, 0
    %751 = vmatprep.subr.mxu0 0.0
    %752 = vmatpush1.xpose.msra.mxu0 %v749
    %753 = vmatprep.subr.mxu0 0.0
    %754 = vmatpush1.xpose.msra.mxu0 0.0
    %755 = vmatprep.subr.mxu0 0.0
    %756 = vmatpush1.xpose.msra.mxu0 0.0
    %757 = vmatprep.subr.mxu0 0.0
    %758 = vmatpush1.xpose.msra.mxu0 0.0
    %759 = vmatprep.subr.mxu0 0.0
    %760 = vmatpush1.xpose.msra.mxu0 0.0
    %761 = vmatprep.subr.mxu0 0.0
    %762 = vmatpush1.xpose.msra.mxu0 0.0
    %763 = vmatprep.subr.mxu0 0.0
    %764 = vmatpush1.xpose.msra.mxu0 0.0
    %765 = vmatprep.subr.mxu0 0.0
    %766 = vmatpush1.xpose.msra.mxu0 0.0
    %767 = vmatprep.subr.mxu0 0.0
    %768 = vmatpush1.xpose.msra.mxu0 0.0
    %769 = vmatprep.subr.mxu0 0.0
    %770 = vmatpush1.xpose.msra.mxu0 0.0
    %771 = vmatprep.subr.mxu0 0.0
    %772 = vmatpush1.xpose.msra.mxu0 0.0
    %773 = vmatprep.subr.mxu0 0.0
    %774 = vmatpush1.xpose.msra.mxu0 0.0
    %775 = vmatprep.subr.mxu0 0.0
    %776 = vmatpush1.xpose.msra.mxu0 0.0
    %777 = vmatprep.subr.mxu0 0.0
    %778 = vmatpush1.xpose.msra.mxu0 0.0
    %779 = vmatprep.subr.mxu0 0.0
    %780 = vmatpush1.xpose.msra.mxu0 0.0
    %781 = vmatprep.subr.mxu0 0.0
    %782 = vmatpush1.xpose.msra.mxu0 0.0
    %783 = vmatprep.subr.mxu0 0.0
    %784 = vmatpush1.xpose.msra.mxu0 0.0
    %785 = vmatprep.subr.mxu0 0.0
    %786 = vmatpush1.xpose.msra.mxu0 0.0
    %787 = vmatprep.subr.mxu0 0.0
    %788 = vmatpush1.xpose.msra.mxu0 0.0
    %789 = vmatprep.subr.mxu0 0.0
    %790 = vmatpush1.xpose.msra.mxu0 0.0
    %791 = vmatprep.subr.mxu0 0.0
    %792 = vmatpush1.xpose.msra.mxu0 0.0
    %793 = vmatprep.subr.mxu0 0.0
    %794 = vmatpush1.xpose.msra.mxu0 0.0
    %795 = vmatprep.subr.mxu0 0.0
    %796 = vmatpush1.xpose.msra.mxu0 0.0
    %797 = vmatprep.subr.mxu0 0.0
    %798 = vmatpush1.xpose.msra.mxu0 0.0
    %799 = vmatprep.subr.mxu0 0.0
    %800 = vmatpush1.xpose.msra.mxu0 0.0
    %801 = vmatprep.subr.mxu0 0.0
    %802 = vmatpush1.xpose.msra.mxu0 0.0
    %803 = vmatprep.subr.mxu0 0.0
    %804 = vmatpush1.xpose.msra.mxu0 0.0
    %805 = vmatprep.subr.mxu0 0.0
    %806 = vmatpush1.xpose.msra.mxu0 0.0
    %807 = vmatprep.subr.mxu0 0.0
    %808 = vmatpush1.xpose.msra.mxu0 0.0
    %809 = vmatprep.subr.mxu0 0.0
    %810 = vmatpush1.xpose.msra.mxu0 0.0
    %811 = vmatprep.subr.mxu0 0.0
    %812 = vmatpush1.xpose.msra.mxu0 0.0
    %813 = vmatprep.subr.mxu0 0.0
    %814 = vmatpush1.xpose.msra.mxu0 0.0
    %815 = vmatprep.mubr.f32.mxu0 0.0
    %816 = vmatmul.mubr.f32.gmra.mrb[0].mxu0 %v747
    %v817 = vpop.f32.mrb[0].mxu0
    %v818 = vadd.f32 0.0, %v817
    %v819 = vpop.f32.mrb[0].mxu0
    %820 = vdwg.mxu0
    %v821 = vsel %vm302, %v287, 0
    %v823 = vsel %vm302, %v301, 0
    %825 = vmatprep.subr.mxu0 0.0
    %826 = vmatpush1.xpose.msra.mxu0 %v823
    %827 = vmatprep.subr.mxu0 0.0
    %828 = vmatpush1.xpose.msra.mxu0 0.0
    %829 = vmatprep.subr.mxu0 0.0
    %830 = vmatpush1.xpose.msra.mxu0 0.0
    %831 = vmatprep.subr.mxu0 0.0
    %832 = vmatpush1.xpose.msra.mxu0 0.0
    %833 = vmatprep.subr.mxu0 0.0
    %834 = vmatpush1.xpose.msra.mxu0 0.0
    %835 = vmatprep.subr.mxu0 0.0
    %836 = vmatpush1.xpose.msra.mxu0 0.0
    %837 = vmatprep.subr.mxu0 0.0
    %838 = vmatpush1.xpose.msra.mxu0 0.0
    %839 = vmatprep.subr.mxu0 0.0
    %840 = vmatpush1.xpose.msra.mxu0 0.0
    %841 = vmatprep.subr.mxu0 0.0
    %842 = vmatpush1.xpose.msra.mxu0 0.0
    %843 = vmatprep.subr.mxu0 0.0
    %844 = vmatpush1.xpose.msra.mxu0 0.0
    %845 = vmatprep.subr.mxu0 0.0
    %846 = vmatpush1.xpose.msra.mxu0 0.0
    %847 = vmatprep.subr.mxu0 0.0
    %848 = vmatpush1.xpose.msra.mxu0 0.0
    %849 = vmatprep.subr.mxu0 0.0
    %850 = vmatpush1.xpose.msra.mxu0 0.0
    %851 = vmatprep.subr.mxu0 0.0
    %852 = vmatpush1.xpose.msra.mxu0 0.0
    %853 = vmatprep.subr.mxu0 0.0
    %854 = vmatpush1.xpose.msra.mxu0 0.0
    %855 = vmatprep.subr.mxu0 0.0
    %856 = vmatpush1.xpose.msra.mxu0 0.0
    %857 = vmatprep.subr.mxu0 0.0
    %858 = vmatpush1.xpose.msra.mxu0 0.0
    %859 = vmatprep.subr.mxu0 0.0
    %860 = vmatpush1.xpose.msra.mxu0 0.0
    %861 = vmatprep.subr.mxu0 0.0
    %862 = vmatpush1.xpose.msra.mxu0 0.0
    %863 = vmatprep.subr.mxu0 0.0
    %864 = vmatpush1.xpose.msra.mxu0 0.0
    %865 = vmatprep.subr.mxu0 0.0
    %866 = vmatpush1.xpose.msra.mxu0 0.0
    %867 = vmatprep.subr.mxu0 0.0
    %868 = vmatpush1.xpose.msra.mxu0 0.0
    %869 = vmatprep.subr.mxu0 0.0
    %870 = vmatpush1.xpose.msra.mxu0 0.0
    %871 = vmatprep.subr.mxu0 0.0
    %872 = vmatpush1.xpose.msra.mxu0 0.0
    %873 = vmatprep.subr.mxu0 0.0
    %874 = vmatpush1.xpose.msra.mxu0 0.0
    %875 = vmatprep.subr.mxu0 0.0
    %876 = vmatpush1.xpose.msra.mxu0 0.0
    %877 = vmatprep.subr.mxu0 0.0
    %878 = vmatpush1.xpose.msra.mxu0 0.0
    %879 = vmatprep.subr.mxu0 0.0
    %880 = vmatpush1.xpose.msra.mxu0 0.0
    %881 = vmatprep.subr.mxu0 0.0
    %882 = vmatpush1.xpose.msra.mxu0 0.0
    %883 = vmatprep.subr.mxu0 0.0
    %884 = vmatpush1.xpose.msra.mxu0 0.0
    %885 = vmatprep.subr.mxu0 0.0
    %886 = vmatpush1.xpose.msra.mxu0 0.0
    %887 = vmatprep.subr.mxu0 0.0
    %888 = vmatpush1.xpose.msra.mxu0 0.0
    %889 = vmatprep.mubr.f32.mxu0 0.0
    %890 = vmatmul.mubr.f32.gmra.mrb[0].mxu0 %v821
    %v891 = vpop.f32.mrb[0].mxu0
    %v892 = vadd.f32 0.0, %v891
    %v893 = vpop.f32.mrb[0].mxu0
    %894 = vdwg.mxu0
    %v895 = vsel %vm302, %v374, -inf
    %896 = vmax.xlane.f32.xlu0 %v895
    %v897 = vpop.xlane.xlu0 %896
    %v898 = vsel %vm302, %v448, -inf
    %899 = vmax.xlane.f32.xlu0 %v898
    %v900 = vpop.xlane.xlu0 %899
    %v901 = vsel %vm302, %v522, -inf
    %902 = vmax.xlane.f32.xlu0 %v901
    %v903 = vpop.xlane.xlu0 %902
    %v904 = vsel %vm302, %v596, -inf
    %905 = vmax.xlane.f32.xlu0 %v904
    %v906 = vpop.xlane.xlu0 %905
    %v907 = vsel %vm302, %v670, -inf
    %908 = vmax.xlane.f32.xlu0 %v907
    %v909 = vpop.xlane.xlu0 %908
    %v910 = vsel %vm302, %v744, -inf
    %911 = vmax.xlane.f32.xlu0 %v910
    %v912 = vpop.xlane.xlu0 %911
    %v913 = vsel %vm302, %v818, -inf
    %914 = vmax.xlane.f32.xlu0 %v913
    %v915 = vpop.xlane.xlu0 %914
    %v916 = vsel %vm302, %v892, -inf
    %917 = vmax.xlane.f32.xlu0 %v916
    %v918 = vpop.xlane.xlu0 %917
    %v919 = vsub.f32 %v374, %v897
    %v920 = vsub.f32 %v448, %v900
    %v921 = vsub.f32 %v522, %v903
    %v922 = vsub.f32 %v596, %v906
    %v923 = vsub.f32 %v670, %v909
    %v924 = vsub.f32 %v744, %v912
    %v925 = vsub.f32 %v818, %v915
    %v926 = vsub.f32 %v892, %v918
    %v927 = vmul.f32 %v919, 1.442695
    %v928 = vpow.pop %v927
    %v929 = vmul.f32 %v920, 1.442695
    %v930 = vpow.pop %v929
    %v931 = vmul.f32 %v921, 1.442695
    %v932 = vpow.pop %v931
    %v933 = vmul.f32 %v922, 1.442695
    %v934 = vpow.pop %v933
    %v935 = vmul.f32 %v923, 1.442695
    %v936 = vpow.pop %v935
    %v937 = vmul.f32 %v924, 1.442695
    %v938 = vpow.pop %v937
    %v939 = vmul.f32 %v925, 1.442695
    %v940 = vpow.pop %v939
    %v941 = vmul.f32 %v926, 1.442695
    %v942 = vpow.pop %v941
    %v943 = vsel %vm302, %v928, 0.0
    %944 = vadd.xlane.f32.xlu0 %v943
    %v945 = vpop.xlane.xlu0 %944
    %v946 = vsel %vm302, %v930, 0.0
    %947 = vadd.xlane.f32.xlu0 %v946
    %v948 = vpop.xlane.xlu0 %947
    %v949 = vsel %vm302, %v932, 0.0
    %950 = vadd.xlane.f32.xlu0 %v949
    %v951 = vpop.xlane.xlu0 %950
    %v952 = vsel %vm302, %v934, 0.0
    %953 = vadd.xlane.f32.xlu0 %v952
    %v954 = vpop.xlane.xlu0 %953
    %v955 = vsel %vm302, %v936, 0.0
    %956 = vadd.xlane.f32.xlu0 %v955
    %v957 = vpop.xlane.xlu0 %956
    %v958 = vsel %vm302, %v938, 0.0
    %959 = vadd.xlane.f32.xlu0 %v958
    %v960 = vpop.xlane.xlu0 %959
    %v961 = vsel %vm302, %v940, 0.0
    %962 = vadd.xlane.f32.xlu0 %v961
    %v963 = vpop.xlane.xlu0 %962
    %v964 = vsel %vm302, %v942, 0.0
    %965 = vadd.xlane.f32.xlu0 %v964
    %v966 = vpop.xlane.xlu0 %965
    %v967 = vrcp.pop %v945
    %v968 = vmul.f32 %v928, %v967
    %v969 = vrcp.pop %v948
    %v970 = vmul.f32 %v930, %v969
    %v971 = vrcp.pop %v951
    %v972 = vmul.f32 %v932, %v971
    %v973 = vrcp.pop %v954
    %v974 = vmul.f32 %v934, %v973
    %v975 = vrcp.pop %v957
    %v976 = vmul.f32 %v936, %v975
    %v977 = vrcp.pop %v960
    %v978 = vmul.f32 %v938, %v977
    %v979 = vrcp.pop %v963
    %v980 = vmul.f32 %v940, %v979
    %v981 = vrcp.pop %v966
    %v982 = vmul.f32 %v942, %v981
    %983 = vrot.lane.b32.xlu0 %v266, 96
    %v984 = vpop.permute.xlu0 %983
    %v987 = vsel %vm302, %v968, 0
    %989 = vmatprep.subr.mxu0 0.0
    %990 = vmatpush1.msra.mxu0 %v984
    %991 = vmatprep.subr.mxu0 0.0
    %992 = vmatpush1.msra.mxu0 0.0
    %993 = vmatprep.subr.mxu0 0.0
    %994 = vmatpush1.msra.mxu0 0.0
    %995 = vmatprep.subr.mxu0 0.0
    %996 = vmatpush1.msra.mxu0 0.0
    %997 = vmatprep.subr.mxu0 0.0
    %998 = vmatpush1.msra.mxu0 0.0
    %999 = vmatprep.subr.mxu0 0.0
    %1000 = vmatpush1.msra.mxu0 0.0
    %1001 = vmatprep.subr.mxu0 0.0
    %1002 = vmatpush1.msra.mxu0 0.0
    %1003 = vmatprep.subr.mxu0 0.0
    %1004 = vmatpush1.msra.mxu0 0.0
    %1005 = vmatprep.subr.mxu0 0.0
    %1006 = vmatpush1.msra.mxu0 0.0
    %1007 = vmatprep.subr.mxu0 0.0
    %1008 = vmatpush1.msra.mxu0 0.0
    %1009 = vmatprep.subr.mxu0 0.0
    %1010 = vmatpush1.msra.mxu0 0.0
    %1011 = vmatprep.subr.mxu0 0.0
    %1012 = vmatpush1.msra.mxu0 0.0
    %1013 = vmatprep.subr.mxu0 0.0
    %1014 = vmatpush1.msra.mxu0 0.0
    %1015 = vmatprep.subr.mxu0 0.0
    %1016 = vmatpush1.msra.mxu0 0.0
    %1017 = vmatprep.subr.mxu0 0.0
    %1018 = vmatpush1.msra.mxu0 0.0
    %1019 = vmatprep.subr.mxu0 0.0
    %1020 = vmatpush1.msra.mxu0 0.0
    %1021 = vmatprep.subr.mxu0 0.0
    %1022 = vmatpush1.msra.mxu0 0.0
    %1023 = vmatprep.subr.mxu0 0.0
    %1024 = vmatpush1.msra.mxu0 0.0
    %1025 = vmatprep.subr.mxu0 0.0
    %1026 = vmatpush1.msra.mxu0 0.0
    %1027 = vmatprep.subr.mxu0 0.0
    %1028 = vmatpush1.msra.mxu0 0.0
    %1029 = vmatprep.subr.mxu0 0.0
    %1030 = vmatpush1.msra.mxu0 0.0
    %1031 = vmatprep.subr.mxu0 0.0
    %1032 = vmatpush1.msra.mxu0 0.0
    %1033 = vmatprep.subr.mxu0 0.0
    %1034 = vmatpush1.msra.mxu0 0.0
    %1035 = vmatprep.subr.mxu0 0.0
    %1036 = vmatpush1.msra.mxu0 0.0
    %1037 = vmatprep.subr.mxu0 0.0
    %1038 = vmatpush1.msra.mxu0 0.0
    %1039 = vmatprep.subr.mxu0 0.0
    %1040 = vmatpush1.msra.mxu0 0.0
    %1041 = vmatprep.subr.mxu0 0.0
    %1042 = vmatpush1.msra.mxu0 0.0
    %1043 = vmatprep.subr.mxu0 0.0
    %1044 = vmatpush1.msra.mxu0 0.0
    %1045 = vmatprep.subr.mxu0 0.0
    %1046 = vmatpush1.msra.mxu0 0.0
    %1047 = vmatprep.subr.mxu0 0.0
    %1048 = vmatpush1.msra.mxu0 0.0
    %1049 = vmatprep.subr.mxu0 0.0
    %1050 = vmatpush1.msra.mxu0 0.0
    %1051 = vmatprep.subr.mxu0 0.0
    %1052 = vmatpush1.msra.mxu0 0.0
    %1053 = vmatprep.mubr.f32.mxu0 0.0
    %1054 = vmatmul.mubr.f32.gmra.mrb[0].mxu0 %v987
    %v1055 = vpop.f32.mrb[0].mxu0
    %v1056 = vadd.f32 0.0, %v1055
    %v1057 = vpop.f32.mrb[0].mxu0
    %1058 = vdwg.mxu0
    %1059 = vrot.lane.b32.xlu0 %v271, 96
    %v1060 = vpop.permute.xlu0 %1059
    %v1063 = vsel %vm302, %v970, 0
    %1065 = vmatprep.subr.mxu0 0.0
    %1066 = vmatpush1.msra.mxu0 %v1060
    %1067 = vmatprep.subr.mxu0 0.0
    %1068 = vmatpush1.msra.mxu0 0.0
    %1069 = vmatprep.subr.mxu0 0.0
    %1070 = vmatpush1.msra.mxu0 0.0
    %1071 = vmatprep.subr.mxu0 0.0
    %1072 = vmatpush1.msra.mxu0 0.0
    %1073 = vmatprep.subr.mxu0 0.0
    %1074 = vmatpush1.msra.mxu0 0.0
    %1075 = vmatprep.subr.mxu0 0.0
    %1076 = vmatpush1.msra.mxu0 0.0
    %1077 = vmatprep.subr.mxu0 0.0
    %1078 = vmatpush1.msra.mxu0 0.0
    %1079 = vmatprep.subr.mxu0 0.0
    %1080 = vmatpush1.msra.mxu0 0.0
    %1081 = vmatprep.subr.mxu0 0.0
    %1082 = vmatpush1.msra.mxu0 0.0
    %1083 = vmatprep.subr.mxu0 0.0
    %1084 = vmatpush1.msra.mxu0 0.0
    %1085 = vmatprep.subr.mxu0 0.0
    %1086 = vmatpush1.msra.mxu0 0.0
    %1087 = vmatprep.subr.mxu0 0.0
    %1088 = vmatpush1.msra.mxu0 0.0
    %1089 = vmatprep.subr.mxu0 0.0
    %1090 = vmatpush1.msra.mxu0 0.0
    %1091 = vmatprep.subr.mxu0 0.0
    %1092 = vmatpush1.msra.mxu0 0.0
    %1093 = vmatprep.subr.mxu0 0.0
    %1094 = vmatpush1.msra.mxu0 0.0
    %1095 = vmatprep.subr.mxu0 0.0
    %1096 = vmatpush1.msra.mxu0 0.0
    %1097 = vmatprep.subr.mxu0 0.0
    %1098 = vmatpush1.msra.mxu0 0.0
    %1099 = vmatprep.subr.mxu0 0.0
    %1100 = vmatpush1.msra.mxu0 0.0
    %1101 = vmatprep.subr.mxu0 0.0
    %1102 = vmatpush1.msra.mxu0 0.0
    %1103 = vmatprep.subr.mxu0 0.0
    %1104 = vmatpush1.msra.mxu0 0.0
    %1105 = vmatprep.subr.mxu0 0.0
    %1106 = vmatpush1.msra.mxu0 0.0
    %1107 = vmatprep.subr.mxu0 0.0
    %1108 = vmatpush1.msra.mxu0 0.0
    %1109 = vmatprep.subr.mxu0 0.0
    %1110 = vmatpush1.msra.mxu0 0.0
    %1111 = vmatprep.subr.mxu0 0.0
    %1112 = vmatpush1.msra.mxu0 0.0
    %1113 = vmatprep.subr.mxu0 0.0
    %1114 = vmatpush1.msra.mxu0 0.0
    %1115 = vmatprep.subr.mxu0 0.0
    %1116 = vmatpush1.msra.mxu0 0.0
    %1117 = vmatprep.subr.mxu0 0.0
    %1118 = vmatpush1.msra.mxu0 0.0
    %1119 = vmatprep.subr.mxu0 0.0
    %1120 = vmatpush1.msra.mxu0 0.0
    %1121 = vmatprep.subr.mxu0 0.0
    %1122 = vmatpush1.msra.mxu0 0.0
    %1123 = vmatprep.subr.mxu0 0.0
    %1124 = vmatpush1.msra.mxu0 0.0
    %1125 = vmatprep.subr.mxu0 0.0
    %1126 = vmatpush1.msra.mxu0 0.0
    %1127 = vmatprep.subr.mxu0 0.0
    %1128 = vmatpush1.msra.mxu0 0.0
    %1129 = vmatprep.mubr.f32.mxu0 0.0
    %1130 = vmatmul.mubr.f32.gmra.mrb[0].mxu0 %v1063
    %v1131 = vpop.f32.mrb[0].mxu0
    %v1132 = vadd.f32 0.0, %v1131
    %v1133 = vpop.f32.mrb[0].mxu0
    %1134 = vdwg.mxu0
    %1135 = vrot.lane.b32.xlu0 %v291, 96
    %v1136 = vpop.permute.xlu0 %1135
    %v1139 = vsel %vm302, %v972, 0
    %1141 = vmatprep.subr.mxu0 0.0
    %1142 = vmatpush1.msra.mxu0 %v1136
    %1143 = vmatprep.subr.mxu0 0.0
    %1144 = vmatpush1.msra.mxu0 0.0
    %1145 = vmatprep.subr.mxu0 0.0
    %1146 = vmatpush1.msra.mxu0 0.0
    %1147 = vmatprep.subr.mxu0 0.0
    %1148 = vmatpush1.msra.mxu0 0.0
    %1149 = vmatprep.subr.mxu0 0.0
    %1150 = vmatpush1.msra.mxu0 0.0
    %1151 = vmatprep.subr.mxu0 0.0
    %1152 = vmatpush1.msra.mxu0 0.0
    %1153 = vmatprep.subr.mxu0 0.0
    %1154 = vmatpush1.msra.mxu0 0.0
    %1155 = vmatprep.subr.mxu0 0.0
    %1156 = vmatpush1.msra.mxu0 0.0
    %1157 = vmatprep.subr.mxu0 0.0
    %1158 = vmatpush1.msra.mxu0 0.0
    %1159 = vmatprep.subr.mxu0 0.0
    %1160 = vmatpush1.msra.mxu0 0.0
    %1161 = vmatprep.subr.mxu0 0.0
    %1162 = vmatpush1.msra.mxu0 0.0
    %1163 = vmatprep.subr.mxu0 0.0
    %1164 = vmatpush1.msra.mxu0 0.0
    %1165 = vmatprep.subr.mxu0 0.0
    %1166 = vmatpush1.msra.mxu0 0.0
    %1167 = vmatprep.subr.mxu0 0.0
    %1168 = vmatpush1.msra.mxu0 0.0
    %1169 = vmatprep.subr.mxu0 0.0
    %1170 = vmatpush1.msra.mxu0 0.0
    %1171 = vmatprep.subr.mxu0 0.0
    %1172 = vmatpush1.msra.mxu0 0.0
    %1173 = vmatprep.subr.mxu0 0.0
    %1174 = vmatpush1.msra.mxu0 0.0
    %1175 = vmatprep.subr.mxu0 0.0
    %1176 = vmatpush1.msra.mxu0 0.0
    %1177 = vmatprep.subr.mxu0 0.0
    %1178 = vmatpush1.msra.mxu0 0.0
    %1179 = vmatprep.subr.mxu0 0.0
    %1180 = vmatpush1.msra.mxu0 0.0
    %1181 = vmatprep.subr.mxu0 0.0
    %1182 = vmatpush1.msra.mxu0 0.0
    %1183 = vmatprep.subr.mxu0 0.0
    %1184 = vmatpush1.msra.mxu0 0.0
    %1185 = vmatprep.subr.mxu0 0.0
    %1186 = vmatpush1.msra.mxu0 0.0
    %1187 = vmatprep.subr.mxu0 0.0
    %1188 = vmatpush1.msra.mxu0 0.0
    %1189 = vmatprep.subr.mxu0 0.0
    %1190 = vmatpush1.msra.mxu0 0.0
    %1191 = vmatprep.subr.mxu0 0.0
    %1192 = vmatpush1.msra.mxu0 0.0
    %1193 = vmatprep.subr.mxu0 0.0
    %1194 = vmatpush1.msra.mxu0 0.0
    %1195 = vmatprep.subr.mxu0 0.0
    %1196 = vmatpush1.msra.mxu0 0.0
    %1197 = vmatprep.subr.mxu0 0.0
    %1198 = vmatpush1.msra.mxu0 0.0
    %1199 = vmatprep.subr.mxu0 0.0
    %1200 = vmatpush1.msra.mxu0 0.0
    %1201 = vmatprep.subr.mxu0 0.0
    %1202 = vmatpush1.msra.mxu0 0.0
    %1203 = vmatprep.subr.mxu0 0.0
    %1204 = vmatpush1.msra.mxu0 0.0
    %1205 = vmatprep.mubr.f32.mxu0 0.0
    %1206 = vmatmul.mubr.f32.gmra.mrb[0].mxu0 %v1139
    %v1207 = vpop.f32.mrb[0].mxu0
    %v1208 = vadd.f32 0.0, %v1207
    %v1209 = vpop.f32.mrb[0].mxu0
    %1210 = vdwg.mxu0
    %1211 = vrot.lane.b32.xlu0 %v293, 96
    %v1212 = vpop.permute.xlu0 %1211
    %v1215 = vsel %vm302, %v974, 0
    %1217 = vmatprep.subr.mxu0 0.0
    %1218 = vmatpush1.msra.mxu0 %v1212
    %1219 = vmatprep.subr.mxu0 0.0
    %1220 = vmatpush1.msra.mxu0 0.0
    %1221 = vmatprep.subr.mxu0 0.0
    %1222 = vmatpush1.msra.mxu0 0.0
    %1223 = vmatprep.subr.mxu0 0.0
    %1224 = vmatpush1.msra.mxu0 0.0
    %1225 = vmatprep.subr.mxu0 0.0
    %1226 = vmatpush1.msra.mxu0 0.0
    %1227 = vmatprep.subr.mxu0 0.0
    %1228 = vmatpush1.msra.mxu0 0.0
    %1229 = vmatprep.subr.mxu0 0.0
    %1230 = vmatpush1.msra.mxu0 0.0
    %1231 = vmatprep.subr.mxu0 0.0
    %1232 = vmatpush1.msra.mxu0 0.0
    %1233 = vmatprep.subr.mxu0 0.0
    %1234 = vmatpush1.msra.mxu0 0.0
    %1235 = vmatprep.subr.mxu0 0.0
    %1236 = vmatpush1.msra.mxu0 0.0
    %1237 = vmatprep.subr.mxu0 0.0
    %1238 = vmatpush1.msra.mxu0 0.0
    %1239 = vmatprep.subr.mxu0 0.0
    %1240 = vmatpush1.msra.mxu0 0.0
    %1241 = vmatprep.subr.mxu0 0.0
    %1242 = vmatpush1.msra.mxu0 0.0
    %1243 = vmatprep.subr.mxu0 0.0
    %1244 = vmatpush1.msra.mxu0 0.0
    %1245 = vmatprep.subr.mxu0 0.0
    %1246 = vmatpush1.msra.mxu0 0.0
    %1247 = vmatprep.subr.mxu0 0.0
    %1248 = vmatpush1.msra.mxu0 0.0
    %1249 = vmatprep.subr.mxu0 0.0
    %1250 = vmatpush1.msra.mxu0 0.0
    %1251 = vmatprep.subr.mxu0 0.0
    %1252 = vmatpush1.msra.mxu0 0.0
    %1253 = vmatprep.subr.mxu0 0.0
    %1254 = vmatpush1.msra.mxu0 0.0
    %1255 = vmatprep.subr.mxu0 0.0
    %1256 = vmatpush1.msra.mxu0 0.0
    %1257 = vmatprep.subr.mxu0 0.0
    %1258 = vmatpush1.msra.mxu0 0.0
    %1259 = vmatprep.subr.mxu0 0.0
    %1260 = vmatpush1.msra.mxu0 0.0
    %1261 = vmatprep.subr.mxu0 0.0
    %1262 = vmatpush1.msra.mxu0 0.0
    %1263 = vmatprep.subr.mxu0 0.0
    %1264 = vmatpush1.msra.mxu0 0.0
    %1265 = vmatprep.subr.mxu0 0.0
    %1266 = vmatpush1.msra.mxu0 0.0
    %1267 = vmatprep.subr.mxu0 0.0
    %1268 = vmatpush1.msra.mxu0 0.0
    %1269 = vmatprep.subr.mxu0 0.0
    %1270 = vmatpush1.msra.mxu0 0.0
    %1271 = vmatprep.subr.mxu0 0.0
    %1272 = vmatpush1.msra.mxu0 0.0
    %1273 = vmatprep.subr.mxu0 0.0
    %1274 = vmatpush1.msra.mxu0 0.0
    %1275 = vmatprep.subr.mxu0 0.0
    %1276 = vmatpush1.msra.mxu0 0.0
    %1277 = vmatprep.subr.mxu0 0.0
    %1278 = vmatpush1.msra.mxu0 0.0
    %1279 = vmatprep.subr.mxu0 0.0
    %1280 = vmatpush1.msra.mxu0 0.0
    %1281 = vmatprep.mubr.f32.mxu0 0.0
    %1282 = vmatmul.mubr.f32.gmra.mrb[0].mxu0 %v1215
    %v1283 = vpop.f32.mrb[0].mxu0
    %v1284 = vadd.f32 0.0, %v1283
    %v1285 = vpop.f32.mrb[0].mxu0
    %1286 = vdwg.mxu0
    %1287 = vrot.lane.b32.xlu0 %v295, 96
    %v1288 = vpop.permute.xlu0 %1287
    %v1291 = vsel %vm302, %v976, 0
    %1293 = vmatprep.subr.mxu0 0.0
    %1294 = vmatpush1.msra.mxu0 %v1288
    %1295 = vmatprep.subr.mxu0 0.0
    %1296 = vmatpush1.msra.mxu0 0.0
    %1297 = vmatprep.subr.mxu0 0.0
    %1298 = vmatpush1.msra.mxu0 0.0
    %1299 = vmatprep.subr.mxu0 0.0
    %1300 = vmatpush1.msra.mxu0 0.0
    %1301 = vmatprep.subr.mxu0 0.0
    %1302 = vmatpush1.msra.mxu0 0.0
    %1303 = vmatprep.subr.mxu0 0.0
    %1304 = vmatpush1.msra.mxu0 0.0
    %1305 = vmatprep.subr.mxu0 0.0
    %1306 = vmatpush1.msra.mxu0 0.0
    %1307 = vmatprep.subr.mxu0 0.0
    %1308 = vmatpush1.msra.mxu0 0.0
    %1309 = vmatprep.subr.mxu0 0.0
    %1310 = vmatpush1.msra.mxu0 0.0
    %1311 = vmatprep.subr.mxu0 0.0
    %1312 = vmatpush1.msra.mxu0 0.0
    %1313 = vmatprep.subr.mxu0 0.0
    %1314 = vmatpush1.msra.mxu0 0.0
    %1315 = vmatprep.subr.mxu0 0.0
    %1316 = vmatpush1.msra.mxu0 0.0
    %1317 = vmatprep.subr.mxu0 0.0
    %1318 = vmatpush1.msra.mxu0 0.0
    %1319 = vmatprep.subr.mxu0 0.0
    %1320 = vmatpush1.msra.mxu0 0.0
    %1321 = vmatprep.subr.mxu0 0.0
    %1322 = vmatpush1.msra.mxu0 0.0
    %1323 = vmatprep.subr.mxu0 0.0
    %1324 = vmatpush1.msra.mxu0 0.0
    %1325 = vmatprep.subr.mxu0 0.0
    %1326 = vmatpush1.msra.mxu0 0.0
    %1327 = vmatprep.subr.mxu0 0.0
    %1328 = vmatpush1.msra.mxu0 0.0
    %1329 = vmatprep.subr.mxu0 0.0
    %1330 = vmatpush1.msra.mxu0 0.0
    %1331 = vmatprep.subr.mxu0 0.0
    %1332 = vmatpush1.msra.mxu0 0.0
    %1333 = vmatprep.subr.mxu0 0.0
    %1334 = vmatpush1.msra.mxu0 0.0
    %1335 = vmatprep.subr.mxu0 0.0
    %1336 = vmatpush1.msra.mxu0 0.0
    %1337 = vmatprep.subr.mxu0 0.0
    %1338 = vmatpush1.msra.mxu0 0.0
    %1339 = vmatprep.subr.mxu0 0.0
    %1340 = vmatpush1.msra.mxu0 0.0
    %1341 = vmatprep.subr.mxu0 0.0
    %1342 = vmatpush1.msra.mxu0 0.0
    %1343 = vmatprep.subr.mxu0 0.0
    %1344 = vmatpush1.msra.mxu0 0.0
    %1345 = vmatprep.subr.mxu0 0.0
    %1346 = vmatpush1.msra.mxu0 0.0
    %1347 = vmatprep.subr.mxu0 0.0
    %1348 = vmatpush1.msra.mxu0 0.0
    %1349 = vmatprep.subr.mxu0 0.0
    %1350 = vmatpush1.msra.mxu0 0.0
    %1351 = vmatprep.subr.mxu0 0.0
    %1352 = vmatpush1.msra.mxu0 0.0
    %1353 = vmatprep.subr.mxu0 0.0
    %1354 = vmatpush1.msra.mxu0 0.0
    %1355 = vmatprep.subr.mxu0 0.0
    %1356 = vmatpush1.msra.mxu0 0.0
    %1357 = vmatprep.mubr.f32.mxu0 0.0
    %1358 = vmatmul.mubr.f32.gmra.mrb[0].mxu0 %v1291
    %v1359 = vpop.f32.mrb[0].mxu0
    %v1360 = vadd.f32 0.0, %v1359
    %v1361 = vpop.f32.mrb[0].mxu0
    %1362 = vdwg.mxu0
    %1363 = vrot.lane.b32.xlu0 %v297, 96
    %v1364 = vpop.permute.xlu0 %1363
    %v1367 = vsel %vm302, %v978, 0
    %1369 = vmatprep.subr.mxu0 0.0
    %1370 = vmatpush1.msra.mxu0 %v1364
    %1371 = vmatprep.subr.mxu0 0.0
    %1372 = vmatpush1.msra.mxu0 0.0
    %1373 = vmatprep.subr.mxu0 0.0
    %1374 = vmatpush1.msra.mxu0 0.0
    %1375 = vmatprep.subr.mxu0 0.0
    %1376 = vmatpush1.msra.mxu0 0.0
    %1377 = vmatprep.subr.mxu0 0.0
    %1378 = vmatpush1.msra.mxu0 0.0
    %1379 = vmatprep.subr.mxu0 0.0
    %1380 = vmatpush1.msra.mxu0 0.0
    %1381 = vmatprep.subr.mxu0 0.0
    %1382 = vmatpush1.msra.mxu0 0.0
    %1383 = vmatprep.subr.mxu0 0.0
    %1384 = vmatpush1.msra.mxu0 0.0
    %1385 = vmatprep.subr.mxu0 0.0
    %1386 = vmatpush1.msra.mxu0 0.0
    %1387 = vmatprep.subr.mxu0 0.0
    %1388 = vmatpush1.msra.mxu0 0.0
    %1389 = vmatprep.subr.mxu0 0.0
    %1390 = vmatpush1.msra.mxu0 0.0
    %1391 = vmatprep.subr.mxu0 0.0
    %1392 = vmatpush1.msra.mxu0 0.0
    %1393 = vmatprep.subr.mxu0 0.0
    %1394 = vmatpush1.msra.mxu0 0.0
    %1395 = vmatprep.subr.mxu0 0.0
    %1396 = vmatpush1.msra.mxu0 0.0
    %1397 = vmatprep.subr.mxu0 0.0
    %1398 = vmatpush1.msra.mxu0 0.0
    %1399 = vmatprep.subr.mxu0 0.0
    %1400 = vmatpush1.msra.mxu0 0.0
    %1401 = vmatprep.subr.mxu0 0.0
    %1402 = vmatpush1.msra.mxu0 0.0
    %1403 = vmatprep.subr.mxu0 0.0
    %1404 = vmatpush1.msra.mxu0 0.0
    %1405 = vmatprep.subr.mxu0 0.0
    %1406 = vmatpush1.msra.mxu0 0.0
    %1407 = vmatprep.subr.mxu0 0.0
    %1408 = vmatpush1.msra.mxu0 0.0
    %1409 = vmatprep.subr.mxu0 0.0
    %1410 = vmatpush1.msra.mxu0 0.0
    %1411 = vmatprep.subr.mxu0 0.0
    %1412 = vmatpush1.msra.mxu0 0.0
    %1413 = vmatprep.subr.mxu0 0.0
    %1414 = vmatpush1.msra.mxu0 0.0
    %1415 = vmatprep.subr.mxu0 0.0
    %1416 = vmatpush1.msra.mxu0 0.0
    %1417 = vmatprep.subr.mxu0 0.0
    %1418 = vmatpush1.msra.mxu0 0.0
    %1419 = vmatprep.subr.mxu0 0.0
    %1420 = vmatpush1.msra.mxu0 0.0
    %1421 = vmatprep.subr.mxu0 0.0
    %1422 = vmatpush1.msra.mxu0 0.0
    %1423 = vmatprep.subr.mxu0 0.0
    %1424 = vmatpush1.msra.mxu0 0.0
    %1425 = vmatprep.subr.mxu0 0.0
    %1426 = vmatpush1.msra.mxu0 0.0
    %1427 = vmatprep.subr.mxu0 0.0
    %1428 = vmatpush1.msra.mxu0 0.0
    %1429 = vmatprep.subr.mxu0 0.0
    %1430 = vmatpush1.msra.mxu0 0.0
    %1431 = vmatprep.subr.mxu0 0.0
    %1432 = vmatpush1.msra.mxu0 0.0
    %1433 = vmatprep.mubr.f32.mxu0 0.0
    %1434 = vmatmul.mubr.f32.gmra.mrb[0].mxu0 %v1367
    %v1435 = vpop.f32.mrb[0].mxu0
    %v1436 = vadd.f32 0.0, %v1435
    %v1437 = vpop.f32.mrb[0].mxu0
    %1438 = vdwg.mxu0
    %1439 = vrot.lane.b32.xlu0 %v299, 96
    %v1440 = vpop.permute.xlu0 %1439
    %v1443 = vsel %vm302, %v980, 0
    %1445 = vmatprep.subr.mxu0 0.0
    %1446 = vmatpush1.msra.mxu0 %v1440
    %1447 = vmatprep.subr.mxu0 0.0
    %1448 = vmatpush1.msra.mxu0 0.0
    %1449 = vmatprep.subr.mxu0 0.0
    %1450 = vmatpush1.msra.mxu0 0.0
    %1451 = vmatprep.subr.mxu0 0.0
    %1452 = vmatpush1.msra.mxu0 0.0
    %1453 = vmatprep.subr.mxu0 0.0
    %1454 = vmatpush1.msra.mxu0 0.0
    %1455 = vmatprep.subr.mxu0 0.0
    %1456 = vmatpush1.msra.mxu0 0.0
    %1457 = vmatprep.subr.mxu0 0.0
    %1458 = vmatpush1.msra.mxu0 0.0
    %1459 = vmatprep.subr.mxu0 0.0
    %1460 = vmatpush1.msra.mxu0 0.0
    %1461 = vmatprep.subr.mxu0 0.0
    %1462 = vmatpush1.msra.mxu0 0.0
    %1463 = vmatprep.subr.mxu0 0.0
    %1464 = vmatpush1.msra.mxu0 0.0
    %1465 = vmatprep.subr.mxu0 0.0
    %1466 = vmatpush1.msra.mxu0 0.0
    %1467 = vmatprep.subr.mxu0 0.0
    %1468 = vmatpush1.msra.mxu0 0.0
    %1469 = vmatprep.subr.mxu0 0.0
    %1470 = vmatpush1.msra.mxu0 0.0
    %1471 = vmatprep.subr.mxu0 0.0
    %1472 = vmatpush1.msra.mxu0 0.0
    %1473 = vmatprep.subr.mxu0 0.0
    %1474 = vmatpush1.msra.mxu0 0.0
    %1475 = vmatprep.subr.mxu0 0.0
    %1476 = vmatpush1.msra.mxu0 0.0
    %1477 = vmatprep.subr.mxu0 0.0
    %1478 = vmatpush1.msra.mxu0 0.0
    %1479 = vmatprep.subr.mxu0 0.0
    %1480 = vmatpush1.msra.mxu0 0.0
    %1481 = vmatprep.subr.mxu0 0.0
    %1482 = vmatpush1.msra.mxu0 0.0
    %1483 = vmatprep.subr.mxu0 0.0
    %1484 = vmatpush1.msra.mxu0 0.0
    %1485 = vmatprep.subr.mxu0 0.0
    %1486 = vmatpush1.msra.mxu0 0.0
    %1487 = vmatprep.subr.mxu0 0.0
    %1488 = vmatpush1.msra.mxu0 0.0
    %1489 = vmatprep.subr.mxu0 0.0
    %1490 = vmatpush1.msra.mxu0 0.0
    %1491 = vmatprep.subr.mxu0 0.0
    %1492 = vmatpush1.msra.mxu0 0.0
    %1493 = vmatprep.subr.mxu0 0.0
    %1494 = vmatpush1.msra.mxu0 0.0
    %1495 = vmatprep.subr.mxu0 0.0
    %1496 = vmatpush1.msra.mxu0 0.0
    %1497 = vmatprep.subr.mxu0 0.0
    %1498 = vmatpush1.msra.mxu0 0.0
    %1499 = vmatprep.subr.mxu0 0.0
    %1500 = vmatpush1.msra.mxu0 0.0
    %1501 = vmatprep.subr.mxu0 0.0
    %1502 = vmatpush1.msra.mxu0 0.0
    %1503 = vmatprep.subr.mxu0 0.0
    %1504 = vmatpush1.msra.mxu0 0.0
    %1505 = vmatprep.subr.mxu0 0.0
    %1506 = vmatpush1.msra.mxu0 0.0
    %1507 = vmatprep.subr.mxu0 0.0
    %1508 = vmatpush1.msra.mxu0 0.0
    %1509 = vmatprep.mubr.f32.mxu0 0.0
    %1510 = vmatmul.mubr.f32.gmra.mrb[0].mxu0 %v1443
    %v1511 = vpop.f32.mrb[0].mxu0
    %v1512 = vadd.f32 0.0, %v1511
    %v1513 = vpop.f32.mrb[0].mxu0
    %1514 = vdwg.mxu0
    %1515 = vrot.lane.b32.xlu0 %v301, 96
    %v1516 = vpop.permute.xlu0 %1515
    %v1519 = vsel %vm302, %v982, 0
    %1521 = vmatprep.subr.mxu0 0.0
    %1522 = vmatpush1.msra.mxu0 %v1516
    %1523 = vmatprep.subr.mxu0 0.0
    %1524 = vmatpush1.msra.mxu0 0.0
    %1525 = vmatprep.subr.mxu0 0.0
    %1526 = vmatpush1.msra.mxu0 0.0
    %1527 = vmatprep.subr.mxu0 0.0
    %1528 = vmatpush1.msra.mxu0 0.0
    %1529 = vmatprep.subr.mxu0 0.0
    %1530 = vmatpush1.msra.mxu0 0.0
    %1531 = vmatprep.subr.mxu0 0.0
    %1532 = vmatpush1.msra.mxu0 0.0
    %1533 = vmatprep.subr.mxu0 0.0
    %1534 = vmatpush1.msra.mxu0 0.0
    %1535 = vmatprep.subr.mxu0 0.0
    %1536 = vmatpush1.msra.mxu0 0.0
    %1537 = vmatprep.subr.mxu0 0.0
    %1538 = vmatpush1.msra.mxu0 0.0
    %1539 = vmatprep.subr.mxu0 0.0
    %1540 = vmatpush1.msra.mxu0 0.0
    %1541 = vmatprep.subr.mxu0 0.0
    %1542 = vmatpush1.msra.mxu0 0.0
    %1543 = vmatprep.subr.mxu0 0.0
    %1544 = vmatpush1.msra.mxu0 0.0
    %1545 = vmatprep.subr.mxu0 0.0
    %1546 = vmatpush1.msra.mxu0 0.0
    %1547 = vmatprep.subr.mxu0 0.0
    %1548 = vmatpush1.msra.mxu0 0.0
    %1549 = vmatprep.subr.mxu0 0.0
    %1550 = vmatpush1.msra.mxu0 0.0
    %1551 = vmatprep.subr.mxu0 0.0
    %1552 = vmatpush1.msra.mxu0 0.0
    %1553 = vmatprep.subr.mxu0 0.0
    %1554 = vmatpush1.msra.mxu0 0.0
    %1555 = vmatprep.subr.mxu0 0.0
    %1556 = vmatpush1.msra.mxu0 0.0
    %1557 = vmatprep.subr.mxu0 0.0
    %1558 = vmatpush1.msra.mxu0 0.0
    %1559 = vmatprep.subr.mxu0 0.0
    %1560 = vmatpush1.msra.mxu0 0.0
    %1561 = vmatprep.subr.mxu0 0.0
    %1562 = vmatpush1.msra.mxu0 0.0
    %1563 = vmatprep.subr.mxu0 0.0
    %1564 = vmatpush1.msra.mxu0 0.0
    %1565 = vmatprep.subr.mxu0 0.0
    %1566 = vmatpush1.msra.mxu0 0.0
    %1567 = vmatprep.subr.mxu0 0.0
    %1568 = vmatpush1.msra.mxu0 0.0
    %1569 = vmatprep.subr.mxu0 0.0
    %1570 = vmatpush1.msra.mxu0 0.0
    %1571 = vmatprep.subr.mxu0 0.0
    %1572 = vmatpush1.msra.mxu0 0.0
    %1573 = vmatprep.subr.mxu0 0.0
    %1574 = vmatpush1.msra.mxu0 0.0
    %1575 = vmatprep.subr.mxu0 0.0
    %1576 = vmatpush1.msra.mxu0 0.0
    %1577 = vmatprep.subr.mxu0 0.0
    %1578 = vmatpush1.msra.mxu0 0.0
    %1579 = vmatprep.subr.mxu0 0.0
    %1580 = vmatpush1.msra.mxu0 0.0
    %1581 = vmatprep.subr.mxu0 0.0
    %1582 = vmatpush1.msra.mxu0 0.0
    %1583 = vmatprep.subr.mxu0 0.0
    %1584 = vmatpush1.msra.mxu0 0.0
    %1585 = vmatprep.mubr.f32.mxu0 0.0
    %1586 = vmatmul.mubr.f32.gmra.mrb[0].mxu0 %v1519
    %v1587 = vpop.f32.mrb[0].mxu0
    %v1588 = vadd.f32 0.0, %v1587
    %v1589 = vpop.f32.mrb[0].mxu0
    %1590 = vdwg.mxu0
    %1593 = vrot.lane.b32.xlu0 %v1208, 8
    %v1594 = vpop.permute.xlu0 %1593
    %1595 = vrot.lane.b32.xlu0 %v1284, 8
    %v1596 = vpop.permute.xlu0 %1595
    %1601 = vrot.lane.b32.xlu0 %v1360, 16
    %v1602 = vpop.permute.xlu0 %1601
    %1603 = vrot.lane.b32.xlu0 %v1436, 16
    %v1604 = vpop.permute.xlu0 %1603
    %1609 = vrot.lane.b32.xlu0 %v1512, 24
    %v1610 = vpop.permute.xlu0 %1609
    %1611 = vrot.lane.b32.xlu0 %v1588, 24
    %v1612 = vpop.permute.xlu0 %1611
    %v1615 = vsel %vm302, %v1056, %v1594
    %v1616 = vsel %vm302, %v1132, %v1596
    %vm1617 = vcmask 130048
    %v1618 = vsel %vm1617, %v1615, %v1602
    %v1619 = vsel %vm1617, %v1616, %v1604
    %vm1620 = vcmask 195584
    %v1621 = vsel %vm1620, %v1618, %v1610
    %v1622 = vsel %vm1620, %v1619, %v1612
    %v1623 = vld [vmem:[%s5] sm:$0xff]
    %v1624 = vld [vmem:[%s5 + $0x8] sm:$0xff]
    %v1625 = vld [vmem:[%s5 + $0x10] sm:$0xff]
    %v1626 = vld [vmem:[%s5 + $0x18] sm:$0xff]
    %v1627 = vlaneseq
    %v1628 = vshrl.u32 %v1627, 7
    %v1629 = vsub.s32 1, %v1628
    %v1630 = vrot.slane %v87, %v1629
    %v1632 = vsel %vm100, %v1621, 0
    %v1635 = vsel %vm100, %v1622, 0
    %1637 = vmatprep.subr.mxu0 0.0
    %1638 = vmatpush1.msra.mxu0 %v1623
    %1639 = vmatprep.subr.mxu0 0.0
    %1640 = vmatpush1.msra.mxu0 %v1624
    %1641 = vmatprep.subr.mxu0 0.0
    %1642 = vmatpush1.msra.mxu0 %v1625
    %1643 = vmatprep.subr.mxu0 0.0
    %1644 = vmatpush1.msra.mxu0 %v1626
    %1645 = vmatprep.subr.mxu0 0.0
    %1646 = vmatpush1.msra.mxu0 0.0
    %1647 = vmatprep.subr.mxu0 0.0
    %1648 = vmatpush1.msra.mxu0 0.0
    %1649 = vmatprep.subr.mxu0 0.0
    %1650 = vmatpush1.msra.mxu0 0.0
    %1651 = vmatprep.subr.mxu0 0.0
    %1652 = vmatpush1.msra.mxu0 0.0
    %1653 = vmatprep.subr.mxu0 0.0
    %1654 = vmatpush1.msra.mxu0 0.0
    %1655 = vmatprep.subr.mxu0 0.0
    %1656 = vmatpush1.msra.mxu0 0.0
    %1657 = vmatprep.subr.mxu0 0.0
    %1658 = vmatpush1.msra.mxu0 0.0
    %1659 = vmatprep.subr.mxu0 0.0
    %1660 = vmatpush1.msra.mxu0 0.0
    %1661 = vmatprep.subr.mxu0 0.0
    %1662 = vmatpush1.msra.mxu0 0.0
    %1663 = vmatprep.subr.mxu0 0.0
    %1664 = vmatpush1.msra.mxu0 0.0
    %1665 = vmatprep.subr.mxu0 0.0
    %1666 = vmatpush1.msra.mxu0 0.0
    %1667 = vmatprep.subr.mxu0 0.0
    %1668 = vmatpush1.msra.mxu0 0.0
    %1669 = vmatprep.subr.mxu0 0.0
    %1670 = vmatpush1.msra.mxu0 0.0
    %1671 = vmatprep.subr.mxu0 0.0
    %1672 = vmatpush1.msra.mxu0 0.0
    %1673 = vmatprep.subr.mxu0 0.0
    %1674 = vmatpush1.msra.mxu0 0.0
    %1675 = vmatprep.subr.mxu0 0.0
    %1676 = vmatpush1.msra.mxu0 0.0
    %1677 = vmatprep.subr.mxu0 0.0
    %1678 = vmatpush1.msra.mxu0 0.0
    %1679 = vmatprep.subr.mxu0 0.0
    %1680 = vmatpush1.msra.mxu0 0.0
    %1681 = vmatprep.subr.mxu0 0.0
    %1682 = vmatpush1.msra.mxu0 0.0
    %1683 = vmatprep.subr.mxu0 0.0
    %1684 = vmatpush1.msra.mxu0 0.0
    %1685 = vmatprep.subr.mxu0 0.0
    %1686 = vmatpush1.msra.mxu0 0.0
    %1687 = vmatprep.subr.mxu0 0.0
    %1688 = vmatpush1.msra.mxu0 0.0
    %1689 = vmatprep.subr.mxu0 0.0
    %1690 = vmatpush1.msra.mxu0 0.0
    %1691 = vmatprep.subr.mxu0 0.0
    %1692 = vmatpush1.msra.mxu0 0.0
    %1693 = vmatprep.subr.mxu0 0.0
    %1694 = vmatpush1.msra.mxu0 0.0
    %1695 = vmatprep.subr.mxu0 0.0
    %1696 = vmatpush1.msra.mxu0 0.0
    %1697 = vmatprep.subr.mxu0 0.0
    %1698 = vmatpush1.msra.mxu0 0.0
    %1699 = vmatprep.subr.mxu0 0.0
    %1700 = vmatpush1.msra.mxu0 0.0
    %1701 = vmatprep.mubr.f32.mxu0 0.0
    %1702 = vmatmul.mubr.f32.gmra.mrb[0].mxu0 %v1632
    %v1703 = vpop.f32.mrb[0].mxu0
    %v1704 = vadd.f32 %v1630, %v1703
    %v1705 = vpop.f32.mrb[0].mxu0
    %1706 = vmatprep.mubr.f32.mxu0 0.0
    %1707 = vmatmul.mubr.f32.gmra.mrb[0].mxu0 %v1635
    %v1708 = vpop.f32.mrb[0].mxu0
    %v1709 = vadd.f32 %v1630, %v1708
    %v1710 = vpop.f32.mrb[0].mxu0
    %1711 = vdwg.mxu0
    %v1712 = vadd.f32 %v88, %v1704
    %v1713 = vadd.f32 %v89, %v1709
    %v1714 = vsel %vm100, %v1712, 0.0
    %1715 = vadd.xlane.f32.xlu0 %v1714
    %v1716 = vpop.xlane.xlu0 %1715
    %v1717 = vsel %vm100, %v1713, 0.0
    %1718 = vadd.xlane.f32.xlu0 %v1717
    %v1719 = vpop.xlane.xlu0 %1718
    %v1720 = vrcp.pop 32.0
    %v1721 = vmul.f32 %v1716, %v1720
    %v1722 = vmul.f32 %v1719, %v1720
    %v1723 = vsub.f32 %v1712, %v1721
    %v1724 = vsub.f32 %v1713, %v1722
    %v1725 = vmul.f32 %v1723, %v1723
    %v1726 = vmul.f32 %v1724, %v1724
    %v1727 = vsel %vm100, %v1725, 0.0
    %1728 = vadd.xlane.f32.xlu0 %v1727
    %v1729 = vpop.xlane.xlu0 %1728
    %v1730 = vsel %vm100, %v1726, 0.0
    %1731 = vadd.xlane.f32.xlu0 %v1730
    %v1732 = vpop.xlane.xlu0 %1731
    %v1733 = vmul.f32 %v1729, %v1720
    %v1734 = vmul.f32 %v1732, %v1720
    %v1735 = vadd.f32 %v1733, 1e-05
    %v1736 = vadd.f32 %v1734, 1e-05
    %v1737 = vrsqrt.pop %v1735
    %v1738 = vrsqrt.pop %v1736
    %v1739 = vmul.f32 %v1723, %v1737
    %v1740 = vmul.f32 %v1724, %v1738
    %v1741 = vlaneseq
    %v1742 = vshrl.u32 %v1741, 7
    %v1743 = vsub.s32 3, %v1742
    %v1744 = vrot.slane %v87, %v1743
    %v1745 = vmul.f32 %v1739, %v1744
    %v1746 = vmul.f32 %v1740, %v1744
    %v1747 = vlaneseq
    %v1748 = vshrl.u32 %v1747, 7
    %v1749 = vsub.s32 4, %v1748
    %v1750 = vrot.slane %v87, %v1749
    %v1751 = vadd.f32 %v1745, %v1750
    %v1752 = vadd.f32 %v1746, %v1750
    %v1753 = vpack.c.bf16 %v1752, %v1751
    %v1754 = vld [vmem:[%s6] sm:$0xf]
    %v1755 = vld [vmem:[%s6 + $0x4] sm:$0xf]
    %v1756 = vld [vmem:[%s6 + $0x8] sm:$0xf]
    %v1757 = vld [vmem:[%s6 + $0xc] sm:$0xf]
    %v1758 = vld [vmem:[%s7] sm:$0x1]
    %v1760 = vlaneseq
    %v1761 = vshrl.u32 %v1760, 7
    %v1762 = vsub.s32 0, %v1761
    %v1763 = vrot.slane %v1758, %v1762
    %v1769 = vunpack.c.l.b16 %v1754
    %v1770 = vunpack.c.l.b16 %v1755
    %v1771 = vunpack.c.l.b16 %v1756
    %v1772 = vunpack.c.l.b16 %v1757
    %v1773 = vpack.c.b16 %v1770, %v1769
    %v1774 = vpack.c.b16 %v1772, %v1771
    %v1778 = vsel %vm100, %v1753, 0
    %1780 = vmatprep.subr.bf16.mxu0 0
    %1781 = vmatpush1.bf16.msra.mxu0 %v1773
    %1782 = vmatprep.subr.bf16.mxu0 0
    %1783 = vmatpush1.bf16.msra.mxu0 %v1774
    %1784 = vmatprep.subr.bf16.mxu0 0
    %1785 = vmatpush1.bf16.msra.mxu0 0
    %1786 = vmatprep.subr.bf16.mxu0 0
    %1787 = vmatpush1.bf16.msra.mxu0 0
    %1788 = vmatprep.subr.bf16.mxu0 0
    %1789 = vmatpush1.bf16.msra.mxu0 0
    %1790 = vmatprep.subr.bf16.mxu0 0
    %1791 = vmatpush1.bf16.msra.mxu0 0
    %1792 = vmatprep.subr.bf16.mxu0 0
    %1793 = vmatpush1.bf16.msra.mxu0 0
    %1794 = vmatprep.subr.bf16.mxu0 0
    %1795 = vmatpush1.bf16.msra.mxu0 0
    %1796 = vmatprep.subr.bf16.mxu0 0
    %1797 = vmatpush1.bf16.msra.mxu0 0
    %1798 = vmatprep.subr.bf16.mxu0 0
    %1799 = vmatpush1.bf16.msra.mxu0 0
    %1800 = vmatprep.subr.bf16.mxu0 0
    %1801 = vmatpush1.bf16.msra.mxu0 0
    %1802 = vmatprep.subr.bf16.mxu0 0
    %1803 = vmatpush1.bf16.msra.mxu0 0
    %1804 = vmatprep.subr.bf16.mxu0 0
    %1805 = vmatpush1.bf16.msra.mxu0 0
    %1806 = vmatprep.subr.bf16.mxu0 0
    %1807 = vmatpush1.bf16.msra.mxu0 0
    %1808 = vmatprep.subr.bf16.mxu0 0
    %1809 = vmatpush1.bf16.msra.mxu0 0
    %1810 = vmatprep.subr.bf16.mxu0 0
    %1811 = vmatpush1.bf16.msra.mxu0 0
    %1812 = vmatprep.mubr.bf16.mxu0 0
    %1813 = vmatmul.mubr.bf16.gmra.mrb[0].mxu0 %v1778
    %v1814 = vpop.f32.mrb[0].mxu0
    %v1815 = vadd.f32 %v1763, %v1814
    %v1816 = vpop.f32.mrb[0].mxu0
    %v1817 = vpop.f32.mrb[0].mxu0
    %v1818 = vadd.f32 %v1763, %v1817
    %v1819 = vpop.f32.mrb[0].mxu0
    %1820 = vdwg.mxu0
    %v1821 = vmax.f32 %v1815, 0.0
    %v1822 = vmax.f32 %v1818, 0.0
    %v1823 = vpack.c.bf16 %v1822, %v1821
    %v1824 = vld [vmem:[%s8] sm:$0xf]
    %v1825 = vld [vmem:[%s8 + $0x4] sm:$0xf]
    %v1826 = vld [vmem:[%s8 + $0x8] sm:$0xf]
    %v1827 = vld [vmem:[%s8 + $0xc] sm:$0xf]
    %v1828 = vld [vmem:[%s8 + $0x10] sm:$0xf]
    %v1829 = vld [vmem:[%s8 + $0x14] sm:$0xf]
    %v1830 = vld [vmem:[%s8 + $0x18] sm:$0xf]
    %v1831 = vld [vmem:[%s8 + $0x1c] sm:$0xf]
    %v1832 = vld [vmem:[%s8 + $0x20] sm:$0xf]
    %v1833 = vld [vmem:[%s8 + $0x24] sm:$0xf]
    %v1834 = vld [vmem:[%s8 + $0x28] sm:$0xf]
    %v1835 = vld [vmem:[%s8 + $0x2c] sm:$0xf]
    %v1836 = vld [vmem:[%s8 + $0x30] sm:$0xf]
    %v1837 = vld [vmem:[%s8 + $0x34] sm:$0xf]
    %v1838 = vld [vmem:[%s8 + $0x38] sm:$0xf]
    %v1839 = vld [vmem:[%s8 + $0x3c] sm:$0xf]
    %v1840 = vlaneseq
    %v1841 = vshrl.u32 %v1840, 7
    %v1842 = vsub.s32 2, %v1841
    %v1843 = vrot.slane %v87, %v1842
    %v1860 = vunpack.c.l.b16 %v1824
    %v1861 = vunpack.c.l.b16 %v1825
    %v1862 = vunpack.c.l.b16 %v1826
    %v1863 = vunpack.c.l.b16 %v1827
    %v1864 = vunpack.c.l.b16 %v1828
    %v1865 = vunpack.c.l.b16 %v1829
    %v1866 = vunpack.c.l.b16 %v1830
    %v1867 = vunpack.c.l.b16 %v1831
    %v1868 = vunpack.c.l.b16 %v1832
    %v1869 = vunpack.c.l.b16 %v1833
    %v1870 = vunpack.c.l.b16 %v1834
    %v1871 = vunpack.c.l.b16 %v1835
    %v1872 = vunpack.c.l.b16 %v1836
    %v1873 = vunpack.c.l.b16 %v1837
    %v1874 = vunpack.c.l.b16 %v1838
    %v1875 = vunpack.c.l.b16 %v1839
    %v1876 = vpack.c.b16 %v1861, %v1860
    %v1877 = vpack.c.b16 %v1863, %v1862
    %v1878 = vpack.c.b16 %v1865, %v1864
    %v1879 = vpack.c.b16 %v1867, %v1866
    %v1880 = vpack.c.b16 %v1869, %v1868
    %v1881 = vpack.c.b16 %v1871, %v1870
    %v1882 = vpack.c.b16 %v1873, %v1872
    %v1883 = vpack.c.b16 %v1875, %v1874
    %1892 = vmatprep.subr.bf16.mxu0 0
    %1893 = vmatpush1.bf16.msra.mxu0 %v1876
    %1894 = vmatprep.subr.bf16.mxu0 0
    %1895 = vmatpush1.bf16.msra.mxu0 %v1877
    %1896 = vmatprep.subr.bf16.mxu0 0
    %1897 = vmatpush1.bf16.msra.mxu0 %v1878
    %1898 = vmatprep.subr.bf16.mxu0 0
    %1899 = vmatpush1.bf16.msra.mxu0 %v1879
    %1900 = vmatprep.subr.bf16.mxu0 0
    %1901 = vmatpush1.bf16.msra.mxu0 %v1880
    %1902 = vmatprep.subr.bf16.mxu0 0
    %1903 = vmatpush1.bf16.msra.mxu0 %v1881
    %1904 = vmatprep.subr.bf16.mxu0 0
    %1905 = vmatpush1.bf16.msra.mxu0 %v1882
    %1906 = vmatprep.subr.bf16.mxu0 0
    %1907 = vmatpush1.bf16.msra.mxu0 %v1883
    %1908 = vmatprep.subr.bf16.mxu0 0
    %1909 = vmatpush1.bf16.msra.mxu0 0
    %1910 = vmatprep.subr.bf16.mxu0 0
    %1911 = vmatpush1.bf16.msra.mxu0 0
    %1912 = vmatprep.subr.bf16.mxu0 0
    %1913 = vmatpush1.bf16.msra.mxu0 0
    %1914 = vmatprep.subr.bf16.mxu0 0
    %1915 = vmatpush1.bf16.msra.mxu0 0
    %1916 = vmatprep.subr.bf16.mxu0 0
    %1917 = vmatpush1.bf16.msra.mxu0 0
    %1918 = vmatprep.subr.bf16.mxu0 0
    %1919 = vmatpush1.bf16.msra.mxu0 0
    %1920 = vmatprep.subr.bf16.mxu0 0
    %1921 = vmatpush1.bf16.msra.mxu0 0
    %1922 = vmatprep.subr.bf16.mxu0 0
    %1923 = vmatpush1.bf16.msra.mxu0 0
    %1924 = vmatprep.mubr.bf16.mxu0 0
    %1925 = vmatmul.mubr.bf16.gmra.mrb[0].mxu0 %v1823
    %v1926 = vpop.f32.mrb[0].mxu0
    %v1927 = vadd.f32 %v1843, %v1926
    %v1928 = vpop.f32.mrb[0].mxu0
    %v1929 = vpop.f32.mrb[0].mxu0
    %v1930 = vadd.f32 %v1843, %v1929
    %v1931 = vpop.f32.mrb[0].mxu0
    %1932 = vdwg.mxu0
    %v1933 = vadd.f32 %v1751, %v1927
    %v1934 = vadd.f32 %v1752, %v1930
    %v1935 = vsel %vm100, %v1933, 0.0
    %1936 = vadd.xlane.f32.xlu0 %v1935
    %v1937 = vpop.xlane.xlu0 %1936
    %v1938 = vsel %vm100, %v1934, 0.0
    %1939 = vadd.xlane.f32.xlu0 %v1938
    %v1940 = vpop.xlane.xlu0 %1939
    %v1941 = vmul.f32 %v1937, %v1720
    %v1942 = vmul.f32 %v1940, %v1720
    %v1943 = vsub.f32 %v1933, %v1941
    %v1944 = vsub.f32 %v1934, %v1942
    %v1945 = vmul.f32 %v1943, %v1943
    %v1946 = vmul.f32 %v1944, %v1944
    %v1947 = vsel %vm100, %v1945, 0.0
    %1948 = vadd.xlane.f32.xlu0 %v1947
    %v1949 = vpop.xlane.xlu0 %1948
    %v1950 = vsel %vm100, %v1946, 0.0
    %1951 = vadd.xlane.f32.xlu0 %v1950
    %v1952 = vpop.xlane.xlu0 %1951
    %v1953 = vmul.f32 %v1949, %v1720
    %v1954 = vmul.f32 %v1952, %v1720
    %v1955 = vadd.f32 %v1953, 1e-05
    %v1956 = vadd.f32 %v1954, 1e-05
    %v1957 = vrsqrt.pop %v1955
    %v1958 = vrsqrt.pop %v1956
    %v1959 = vmul.f32 %v1943, %v1957
    %v1960 = vmul.f32 %v1944, %v1958
    %v1961 = vlaneseq
    %v1962 = vshrl.u32 %v1961, 7
    %v1963 = vsub.s32 5, %v1962
    %v1964 = vrot.slane %v87, %v1963
    %v1965 = vmul.f32 %v1959, %v1964
    %v1966 = vmul.f32 %v1960, %v1964
    %v1967 = vlaneseq
    %v1968 = vshrl.u32 %v1967, 7
    %v1969 = vsub.s32 6, %v1968
    %v1970 = vrot.slane %v87, %v1969
    %v1971 = vadd.f32 %v1965, %v1970
    %v1972 = vadd.f32 %v1966, %v1970
    %1973 = vst.msk [vmem:[%s10] sm:$0xff] %vm100, %v1971
    %1974 = vst.msk [vmem:[%s10 + $0x8] sm:$0xff] %vm100, %v1972
    // Predicated region
    $region58: #{fwd.1} parent=1 // pred_check
      _
    $region59: #{fwd.1} parent=1 // pred_check_branch
      %1976 = sbr.rel (0) target = $region61
    $region60: #{fwd.1} parent=1 // pred_region
      _
    $region61: #{fwd.1} parent=1 // pred_fallthru
      _
    // Predicated region
    $region62: #{fwd.1} parent=1 // pred_check
      _
    $region63: #{fwd.1} parent=1 // pred_check_branch
      %1978 = sbr.rel (0) target = $region65
    $region64: #{fwd.1} parent=1 // pred_region
      _
    $region65: #{fwd.1} parent=1 // pred_fallthru
      _
    %1979 = vsyncpa [#allocation3], 1
    %1980 = vsyncpa [#allocation5], 1
    %1981 = vsyncpa [#allocation8], 1

</llo_original>
